<compile_context>
chip_gen: v7x
topology: tpu7x:2x2x1
jax: 0.10.0
libtpu: 0.0.40
codegen_flags: <defaults>
</compile_context>

<pallas_src>
import functools

import jax
import jax.numpy as jnp
from jax import lax
from jax.experimental import pallas as pl
from jax.experimental.pallas import tpu as pltpu


def _set2set_kernel(emb_ref, slab_ref, out_ref):
    """Whole Set2Set forward for the full (small) batch inside one kernel.

    emb_ref  : [B, n, d]      f32
    slab_ref : [2d+1, 5d]     f32  packed parameters:
        rows 0:2d , cols 0:4d   -> W_hr^T  (vstack of (W_ih^T[:d] + W_hh^T), W_ih^T[d:])
        rows 0:2d , cols 4d:5d  -> Wp^T    (pred weight^T, [2d, d])
        row  2d   , cols 0:4d   -> b_ih + b_hh
        row  2d   , cols 4d:5d  -> b_pred
    out_ref  : [B, d]         f32
    """
    B, n, d = emb_ref.shape
    emb = emb_ref[...]                                      # [B, n, d]

    # Static slices of the packed parameter slab (zero-cost views).
    w_hr_t = slab_ref[0:2 * d, 0:4 * d]                     # [2d, 4d]
    wp_t = slab_ref[0:2 * d, 4 * d:5 * d]                   # [2d, d]
    b_pred = slab_ref[2 * d:2 * d + 1, 4 * d:5 * d]         # [1, d]
    # Hoisted bias broadcast (JAX does not CSE broadcast_in_dim inside loops).
    b_lstm = jnp.broadcast_to(slab_ref[2 * d:2 * d + 1, 0:4 * d], (B, 4 * d))

    hr0 = jnp.zeros((B, 2 * d), jnp.float32)                # q_star = [h | r]
    c0 = jnp.zeros((B, d), jnp.float32)

    def body(step, carry):
        hr, c = carry
        # --- LSTM cell: one MXU push (PyTorch gate order: i, f, g, o) ---
        gates = jnp.dot(hr, w_hr_t,
                        preferred_element_type=jnp.float32) + b_lstm  # [B, 4d]
        sig = jax.nn.sigmoid(gates)                         # one wide EUP issue
        i_g = sig[:, 0:d]
        f_g = sig[:, d:2 * d]
        o_g = sig[:, 3 * d:4 * d]
        g_g = jnp.tanh(gates[:, 2 * d:3 * d])
        c_new = f_g * c + i_g * g_g
        h_new = o_g * jnp.tanh(c_new)                       # == q (LSTM output)

        # --- attention over the set (keepdims layouts; normalize r, not a) ---
        e = jnp.sum(emb * h_new[:, None, :], axis=2, keepdims=True)   # [B, n, 1]
        m = jnp.max(e, axis=1, keepdims=True)                          # [B, 1, 1]
        p = jnp.exp(e - m)                                             # [B, n, 1]
        denom = jnp.sum(p, axis=1, keepdims=True)                      # [B, 1, 1]
        r_un = jnp.sum(p * emb, axis=1)                                # [B, d]
        r_new = r_un * pl.reciprocal(denom[:, 0], approx=False)        # [B, d]

        hr_new = jnp.concatenate([h_new, r_new], axis=1)               # [B, 2d]
        return hr_new, c_new

    # n is static -> fully unroll the serial recurrence for LLO overlap.
    hr_f, _ = lax.fori_loop(0, n, body, (hr0, c0), unroll=True)

    # pred Linear on q_star = [h | r], single matmul, then ReLU.
    out = jnp.dot(hr_f, wp_t, preferred_element_type=jnp.float32) + b_pred
    out_ref[...] = jnp.maximum(out, 0.0)


@functools.partial(jax.jit, static_argnames=())
def set2set_pallas(emb, w_ih, w_hh, b_ih, b_hh, w_pred, b_pred):
    B, n, d = emb.shape

    # Pre-fold / pack all parameters into one lane-dense slab outside the kernel.
    w_ih_t = w_ih.T.astype(jnp.float32)                     # [2d, 4d]
    w_hh_t = w_hh.T.astype(jnp.float32)                     # [d, 4d]
    w_hr_t = jnp.concatenate([w_ih_t[:d] + w_hh_t,          # h half (folded)
                              w_ih_t[d:]], axis=0)          # r half   -> [2d, 4d]
    wp_t = w_pred.T.astype(jnp.float32)                     # [2d, d]
    b_row = jnp.concatenate([(b_ih + b_hh).astype(jnp.float32),
                             b_pred.astype(jnp.float32)])[None, :]    # [1, 5d]
    slab = jnp.concatenate(
        [jnp.concatenate([w_hr_t, wp_t], axis=1),           # [2d, 5d]
         b_row], axis=0)                                     # [2d+1, 5d]

    vmem = pl.BlockSpec(memory_space=pltpu.MemorySpace.VMEM)
    return pl.pallas_call(
        _set2set_kernel,
        out_shape=jax.ShapeDtypeStruct((B, d), jnp.float32),
        in_specs=[vmem, vmem],
        out_specs=vmem,
    )(emb.astype(jnp.float32), slab)


def set2set_ref(emb, w_ih, w_hh, b_ih, b_hh, w_pred, b_pred):
    """Pure-JAX reference mirroring the PyTorch forward."""
    B, n, d = emb.shape
    h = jnp.zeros((B, d), jnp.float32)
    c = jnp.zeros((B, d), jnp.float32)
    qs = jnp.zeros((B, 2 * d), jnp.float32)
    for _ in range(n):
        gates = qs @ w_ih.T + h @ w_hh.T + b_ih + b_hh
        i_g = jax.nn.sigmoid(gates[:, 0:d])
        f_g = jax.nn.sigmoid(gates[:, d:2 * d])
        g_g = jnp.tanh(gates[:, 2 * d:3 * d])
        o_g = jax.nn.sigmoid(gates[:, 3 * d:4 * d])
        c = f_g * c + i_g * g_g
        h = o_g * jnp.tanh(c)
        e = jnp.einsum('bnd,bd->bn', emb, h)
        a = jax.nn.softmax(e, axis=1)
        r = jnp.einsum('bn,bnd->bd', a, emb)
        qs = jnp.concatenate([h, r], axis=1)
    out = qs @ w_pred.T + b_pred
    return jnp.maximum(out, 0.0)


if __name__ == "__main__":
    # Small shapes: input_dim d = 16, hidden_dim = 2*d = 32, set size n = 8, batch = 2.
    B, n, d = 2, 8, 16
    hidden = 2 * d

    key = jax.random.PRNGKey(0)
    kx, k1, k2, k3, k4, k5, k6 = jax.random.split(key, 7)

    emb = jax.random.normal(kx, (B, n, d), dtype=jnp.float32)

    # Deterministic parameter init (uniform, PyTorch-style scale).
    s = 1.0 / jnp.sqrt(jnp.float32(d))
    w_ih = jax.random.uniform(k1, (4 * d, hidden), minval=-s, maxval=s, dtype=jnp.float32)
    w_hh = jax.random.uniform(k2, (4 * d, d), minval=-s, maxval=s, dtype=jnp.float32)
    b_ih = jax.random.uniform(k3, (4 * d,), minval=-s, maxval=s, dtype=jnp.float32)
    b_hh = jax.random.uniform(k4, (4 * d,), minval=-s, maxval=s, dtype=jnp.float32)
    sp = 1.0 / jnp.sqrt(jnp.float32(hidden))
    w_pred = jax.random.uniform(k5, (d, hidden), minval=-sp, maxval=sp, dtype=jnp.float32)
    b_pred = jax.random.uniform(k6, (d,), minval=-sp, maxval=sp, dtype=jnp.float32)

    out = set2set_pallas(emb, w_ih, w_hh, b_ih, b_hh, w_pred, b_pred)
    out = jax.block_until_ready(out)

    ref = set2set_ref(emb, w_ih, w_hh, b_ih, b_hh, w_pred, b_pred)
    assert out.shape == (B, d)
    # Tight tolerance: exact softmax reciprocal; only weight-folding / dot-merge
    # fp association differs from the step-by-step reference.
    assert jnp.allclose(out, ref, rtol=1e-4, atol=1e-4), (
        f"max abs diff = {jnp.max(jnp.abs(out - ref))}")

    print("KERNEL_OK")
</pallas_src>

<mosaic_0001>
module attributes {stable_mosaic.version = 11 : i64} {
  func.func @_set2set_kernel(%arg0: memref<2x8x16xf32, #tpu.memory_space<vmem>>, %arg1: memref<33x80xf32, #tpu.memory_space<vmem>>, %arg2: memref<2x16xf32, #tpu.memory_space<vmem>>) attributes {dimension_semantics = [], scalar_prefetch = 0 : i64, scratch_operands = 0 : i64, tpu.core_type = #tpu.core_type<tc>} {
    %c0 = arith.constant 0 : index
    %c0_0 = arith.constant 0 : index
    %c0_1 = arith.constant 0 : index
    %0 = vector.load %arg0[%c0, %c0_0, %c0_1] : memref<2x8x16xf32, #tpu.memory_space<vmem>>, vector<2x8x16xf32>
    %c0_2 = arith.constant 0 : index
    %c0_3 = arith.constant 0 : index
    %1 = vector.load %arg1[%c0_2, %c0_3] : memref<33x80xf32, #tpu.memory_space<vmem>>, vector<32x64xf32>
    %c0_4 = arith.constant 0 : index
    %c64 = arith.constant 64 : index
    %2 = vector.load %arg1[%c0_4, %c64] : memref<33x80xf32, #tpu.memory_space<vmem>>, vector<32x16xf32>
    %c32 = arith.constant 32 : index
    %c64_5 = arith.constant 64 : index
    %3 = vector.load %arg1[%c32, %c64_5] : memref<33x80xf32, #tpu.memory_space<vmem>>, vector<1x16xf32>
    %c32_6 = arith.constant 32 : index
    %c0_7 = arith.constant 0 : index
    %4 = vector.load %arg1[%c32_6, %c0_7] : memref<33x80xf32, #tpu.memory_space<vmem>>, vector<1x64xf32>
    %5 = vector.shape_cast %4 : vector<1x64xf32> to vector<1x64xf32>
    %6 = vector.broadcast %5 : vector<1x64xf32> to vector<2x64xf32>
    %cst = arith.constant 0.000000e+00 : f32
    %7 = vector.broadcast %cst : f32 to vector<2x32xf32>
    %cst_8 = arith.constant 0.000000e+00 : f32
    %8 = vector.broadcast %cst_8 : f32 to vector<2x16xf32>
    %c0_i32 = arith.constant 0 : i32
    %cst_9 = arith.constant dense<0.000000e+00> : vector<2x64xf32>
    %9 = tpu.matmul %7, %1, %cst_9 {dimension_numbers = #tpu.dot_dimension_numbers<[1], [0], [0], [1], [0, 0, 1, 1], [], []>} : vector<2x32xf32>, vector<32x64xf32>, vector<2x64xf32> -> vector<2x64xf32>
    %10 = arith.addf %9, %6 : vector<2x64xf32>
    %11 = arith.negf %10 : vector<2x64xf32>
    %12 = math.exp %11 : vector<2x64xf32>
    %cst_10 = arith.constant 1.000000e+00 : f32
    %13 = vector.broadcast %cst_10 : f32 to vector<2x64xf32>
    %14 = arith.addf %13, %12 : vector<2x64xf32>
    %15 = arith.divf %13, %14 : vector<2x64xf32>
    %16 = vector.extract_strided_slice %15 {offsets = [0, 0], sizes = [2, 16], strides = [1, 1]} : vector<2x64xf32> to vector<2x16xf32>
    %17 = vector.extract_strided_slice %15 {offsets = [0, 16], sizes = [2, 16], strides = [1, 1]} : vector<2x64xf32> to vector<2x16xf32>
    %18 = vector.extract_strided_slice %15 {offsets = [0, 48], sizes = [2, 16], strides = [1, 1]} : vector<2x64xf32> to vector<2x16xf32>
    %19 = vector.extract_strided_slice %10 {offsets = [0, 32], sizes = [2, 16], strides = [1, 1]} : vector<2x64xf32> to vector<2x16xf32>
    %20 = math.tanh %19 : vector<2x16xf32>
    %21 = arith.mulf %17, %8 : vector<2x16xf32>
    %22 = arith.mulf %16, %20 : vector<2x16xf32>
    %23 = arith.addf %21, %22 : vector<2x16xf32>
    %24 = math.tanh %23 : vector<2x16xf32>
    %25 = arith.mulf %18, %24 : vector<2x16xf32>
    %26 = vector.shape_cast %25 : vector<2x16xf32> to vector<2x1x16xf32>
    %27 = vector.broadcast %26 : vector<2x1x16xf32> to vector<2x8x16xf32>
    %28 = arith.mulf %0, %27 : vector<2x8x16xf32>
    %cst_11 = arith.constant dense<0.000000e+00> : vector<2x8xf32>
    %29 = vector.multi_reduction <add>, %28, %cst_11 [2] : vector<2x8x16xf32> to vector<2x8xf32>
    %30 = vector.shape_cast %29 : vector<2x8xf32> to vector<2x8x1xf32>
    %cst_12 = arith.constant dense<0xFF800000> : vector<2x1xf32>
    %31 = vector.multi_reduction <maximumf>, %30, %cst_12 [1] : vector<2x8x1xf32> to vector<2x1xf32>
    %32 = vector.shape_cast %31 : vector<2x1xf32> to vector<2x1x1xf32>
    %33 = vector.broadcast %32 : vector<2x1x1xf32> to vector<2x8x1xf32>
    %34 = arith.subf %30, %33 : vector<2x8x1xf32>
    %35 = math.exp %34 : vector<2x8x1xf32>
    %cst_13 = arith.constant dense<0.000000e+00> : vector<2x1xf32>
    %36 = vector.multi_reduction <add>, %35, %cst_13 [1] : vector<2x8x1xf32> to vector<2x1xf32>
    %37 = vector.shape_cast %36 : vector<2x1xf32> to vector<2x1x1xf32>
    %38 = vector.broadcast %35 : vector<2x8x1xf32> to vector<2x8x16xf32>
    %39 = arith.mulf %38, %0 : vector<2x8x16xf32>
    %cst_14 = arith.constant dense<0.000000e+00> : vector<2x16xf32>
    %40 = vector.multi_reduction <add>, %39, %cst_14 [1] : vector<2x8x16xf32> to vector<2x16xf32>
    %41 = vector.shape_cast %37 : vector<2x1x1xf32> to vector<2x1xf32>
    %42 = tpu.reciprocal %41 : vector<2x1xf32> -> vector<2x1xf32>
    %43 = vector.broadcast %42 : vector<2x1xf32> to vector<2x16xf32>
    %44 = arith.mulf %40, %43 : vector<2x16xf32>
    %45 = tpu.concatenate %25, %44 in 1 : vector<2x16xf32>, vector<2x16xf32> -> vector<2x32xf32>
    %c1_i32 = arith.constant 1 : i32
    %cst_15 = arith.constant dense<0.000000e+00> : vector<2x64xf32>
    %46 = tpu.matmul %45, %1, %cst_15 {dimension_numbers = #tpu.dot_dimension_numbers<[1], [0], [0], [1], [0, 0, 1, 1], [], []>} : vector<2x32xf32>, vector<32x64xf32>, vector<2x64xf32> -> vector<2x64xf32>
    %47 = arith.addf %46, %6 : vector<2x64xf32>
    %48 = arith.negf %47 : vector<2x64xf32>
    %49 = math.exp %48 : vector<2x64xf32>
    %cst_16 = arith.constant 1.000000e+00 : f32
    %50 = vector.broadcast %cst_16 : f32 to vector<2x64xf32>
    %51 = arith.addf %50, %49 : vector<2x64xf32>
    %52 = arith.divf %50, %51 : vector<2x64xf32>
    %53 = vector.extract_strided_slice %52 {offsets = [0, 0], sizes = [2, 16], strides = [1, 1]} : vector<2x64xf32> to vector<2x16xf32>
    %54 = vector.extract_strided_slice %52 {offsets = [0, 16], sizes = [2, 16], strides = [1, 1]} : vector<2x64xf32> to vector<2x16xf32>
    %55 = vector.extract_strided_slice %52 {offsets = [0, 48], sizes = [2, 16], strides = [1, 1]} : vector<2x64xf32> to vector<2x16xf32>
    %56 = vector.extract_strided_slice %47 {offsets = [0, 32], sizes = [2, 16], strides = [1, 1]} : vector<2x64xf32> to vector<2x16xf32>
    %57 = math.tanh %56 : vector<2x16xf32>
    %58 = arith.mulf %54, %23 : vector<2x16xf32>
    %59 = arith.mulf %53, %57 : vector<2x16xf32>
    %60 = arith.addf %58, %59 : vector<2x16xf32>
    %61 = math.tanh %60 : vector<2x16xf32>
    %62 = arith.mulf %55, %61 : vector<2x16xf32>
    %63 = vector.shape_cast %62 : vector<2x16xf32> to vector<2x1x16xf32>
    %64 = vector.broadcast %63 : vector<2x1x16xf32> to vector<2x8x16xf32>
    %65 = arith.mulf %0, %64 : vector<2x8x16xf32>
    %cst_17 = arith.constant dense<0.000000e+00> : vector<2x8xf32>
    %66 = vector.multi_reduction <add>, %65, %cst_17 [2] : vector<2x8x16xf32> to vector<2x8xf32>
    %67 = vector.shape_cast %66 : vector<2x8xf32> to vector<2x8x1xf32>
    %cst_18 = arith.constant dense<0xFF800000> : vector<2x1xf32>
    %68 = vector.multi_reduction <maximumf>, %67, %cst_18 [1] : vector<2x8x1xf32> to vector<2x1xf32>
    %69 = vector.shape_cast %68 : vector<2x1xf32> to vector<2x1x1xf32>
    %70 = vector.broadcast %69 : vector<2x1x1xf32> to vector<2x8x1xf32>
    %71 = arith.subf %67, %70 : vector<2x8x1xf32>
    %72 = math.exp %71 : vector<2x8x1xf32>
    %cst_19 = arith.constant dense<0.000000e+00> : vector<2x1xf32>
    %73 = vector.multi_reduction <add>, %72, %cst_19 [1] : vector<2x8x1xf32> to vector<2x1xf32>
    %74 = vector.shape_cast %73 : vector<2x1xf32> to vector<2x1x1xf32>
    %75 = vector.broadcast %72 : vector<2x8x1xf32> to vector<2x8x16xf32>
    %76 = arith.mulf %75, %0 : vector<2x8x16xf32>
    %cst_20 = arith.constant dense<0.000000e+00> : vector<2x16xf32>
    %77 = vector.multi_reduction <add>, %76, %cst_20 [1] : vector<2x8x16xf32> to vector<2x16xf32>
    %78 = vector.shape_cast %74 : vector<2x1x1xf32> to vector<2x1xf32>
    %79 = tpu.reciprocal %78 : vector<2x1xf32> -> vector<2x1xf32>
    %80 = vector.broadcast %79 : vector<2x1xf32> to vector<2x16xf32>
    %81 = arith.mulf %77, %80 : vector<2x16xf32>
    %82 = tpu.concatenate %62, %81 in 1 : vector<2x16xf32>, vector<2x16xf32> -> vector<2x32xf32>
    %c2_i32 = arith.constant 2 : i32
    %cst_21 = arith.constant dense<0.000000e+00> : vector<2x64xf32>
    %83 = tpu.matmul %82, %1, %cst_21 {dimension_numbers = #tpu.dot_dimension_numbers<[1], [0], [0], [1], [0, 0, 1, 1], [], []>} : vector<2x32xf32>, vector<32x64xf32>, vector<2x64xf32> -> vector<2x64xf32>
    %84 = arith.addf %83, %6 : vector<2x64xf32>
    %85 = arith.negf %84 : vector<2x64xf32>
    %86 = math.exp %85 : vector<2x64xf32>
    %cst_22 = arith.constant 1.000000e+00 : f32
    %87 = vector.broadcast %cst_22 : f32 to vector<2x64xf32>
    %88 = arith.addf %87, %86 : vector<2x64xf32>
    %89 = arith.divf %87, %88 : vector<2x64xf32>
    %90 = vector.extract_strided_slice %89 {offsets = [0, 0], sizes = [2, 16], strides = [1, 1]} : vector<2x64xf32> to vector<2x16xf32>
    %91 = vector.extract_strided_slice %89 {offsets = [0, 16], sizes = [2, 16], strides = [1, 1]} : vector<2x64xf32> to vector<2x16xf32>
    %92 = vector.extract_strided_slice %89 {offsets = [0, 48], sizes = [2, 16], strides = [1, 1]} : vector<2x64xf32> to vector<2x16xf32>
    %93 = vector.extract_strided_slice %84 {offsets = [0, 32], sizes = [2, 16], strides = [1, 1]} : vector<2x64xf32> to vector<2x16xf32>
    %94 = math.tanh %93 : vector<2x16xf32>
    %95 = arith.mulf %91, %60 : vector<2x16xf32>
    %96 = arith.mulf %90, %94 : vector<2x16xf32>
    %97 = arith.addf %95, %96 : vector<2x16xf32>
    %98 = math.tanh %97 : vector<2x16xf32>
    %99 = arith.mulf %92, %98 : vector<2x16xf32>
    %100 = vector.shape_cast %99 : vector<2x16xf32> to vector<2x1x16xf32>
    %101 = vector.broadcast %100 : vector<2x1x16xf32> to vector<2x8x16xf32>
    %102 = arith.mulf %0, %101 : vector<2x8x16xf32>
    %cst_23 = arith.constant dense<0.000000e+00> : vector<2x8xf32>
    %103 = vector.multi_reduction <add>, %102, %cst_23 [2] : vector<2x8x16xf32> to vector<2x8xf32>
    %104 = vector.shape_cast %103 : vector<2x8xf32> to vector<2x8x1xf32>
    %cst_24 = arith.constant dense<0xFF800000> : vector<2x1xf32>
    %105 = vector.multi_reduction <maximumf>, %104, %cst_24 [1] : vector<2x8x1xf32> to vector<2x1xf32>
    %106 = vector.shape_cast %105 : vector<2x1xf32> to vector<2x1x1xf32>
    %107 = vector.broadcast %106 : vector<2x1x1xf32> to vector<2x8x1xf32>
    %108 = arith.subf %104, %107 : vector<2x8x1xf32>
    %109 = math.exp %108 : vector<2x8x1xf32>
    %cst_25 = arith.constant dense<0.000000e+00> : vector<2x1xf32>
    %110 = vector.multi_reduction <add>, %109, %cst_25 [1] : vector<2x8x1xf32> to vector<2x1xf32>
    %111 = vector.shape_cast %110 : vector<2x1xf32> to vector<2x1x1xf32>
    %112 = vector.broadcast %109 : vector<2x8x1xf32> to vector<2x8x16xf32>
    %113 = arith.mulf %112, %0 : vector<2x8x16xf32>
    %cst_26 = arith.constant dense<0.000000e+00> : vector<2x16xf32>
    %114 = vector.multi_reduction <add>, %113, %cst_26 [1] : vector<2x8x16xf32> to vector<2x16xf32>
    %115 = vector.shape_cast %111 : vector<2x1x1xf32> to vector<2x1xf32>
    %116 = tpu.reciprocal %115 : vector<2x1xf32> -> vector<2x1xf32>
    %117 = vector.broadcast %116 : vector<2x1xf32> to vector<2x16xf32>
    %118 = arith.mulf %114, %117 : vector<2x16xf32>
    %119 = tpu.concatenate %99, %118 in 1 : vector<2x16xf32>, vector<2x16xf32> -> vector<2x32xf32>
    %c3_i32 = arith.constant 3 : i32
    %cst_27 = arith.constant dense<0.000000e+00> : vector<2x64xf32>
    %120 = tpu.matmul %119, %1, %cst_27 {dimension_numbers = #tpu.dot_dimension_numbers<[1], [0], [0], [1], [0, 0, 1, 1], [], []>} : vector<2x32xf32>, vector<32x64xf32>, vector<2x64xf32> -> vector<2x64xf32>
    %121 = arith.addf %120, %6 : vector<2x64xf32>
    %122 = arith.negf %121 : vector<2x64xf32>
    %123 = math.exp %122 : vector<2x64xf32>
    %cst_28 = arith.constant 1.000000e+00 : f32
    %124 = vector.broadcast %cst_28 : f32 to vector<2x64xf32>
    %125 = arith.addf %124, %123 : vector<2x64xf32>
    %126 = arith.divf %124, %125 : vector<2x64xf32>
    %127 = vector.extract_strided_slice %126 {offsets = [0, 0], sizes = [2, 16], strides = [1, 1]} : vector<2x64xf32> to vector<2x16xf32>
    %128 = vector.extract_strided_slice %126 {offsets = [0, 16], sizes = [2, 16], strides = [1, 1]} : vector<2x64xf32> to vector<2x16xf32>
    %129 = vector.extract_strided_slice %126 {offsets = [0, 48], sizes = [2, 16], strides = [1, 1]} : vector<2x64xf32> to vector<2x16xf32>
    %130 = vector.extract_strided_slice %121 {offsets = [0, 32], sizes = [2, 16], strides = [1, 1]} : vector<2x64xf32> to vector<2x16xf32>
    %131 = math.tanh %130 : vector<2x16xf32>
    %132 = arith.mulf %128, %97 : vector<2x16xf32>
    %133 = arith.mulf %127, %131 : vector<2x16xf32>
    %134 = arith.addf %132, %133 : vector<2x16xf32>
    %135 = math.tanh %134 : vector<2x16xf32>
    %136 = arith.mulf %129, %135 : vector<2x16xf32>
    %137 = vector.shape_cast %136 : vector<2x16xf32> to vector<2x1x16xf32>
    %138 = vector.broadcast %137 : vector<2x1x16xf32> to vector<2x8x16xf32>
    %139 = arith.mulf %0, %138 : vector<2x8x16xf32>
    %cst_29 = arith.constant dense<0.000000e+00> : vector<2x8xf32>
    %140 = vector.multi_reduction <add>, %139, %cst_29 [2] : vector<2x8x16xf32> to vector<2x8xf32>
    %141 = vector.shape_cast %140 : vector<2x8xf32> to vector<2x8x1xf32>
    %cst_30 = arith.constant dense<0xFF800000> : vector<2x1xf32>
    %142 = vector.multi_reduction <maximumf>, %141, %cst_30 [1] : vector<2x8x1xf32> to vector<2x1xf32>
    %143 = vector.shape_cast %142 : vector<2x1xf32> to vector<2x1x1xf32>
    %144 = vector.broadcast %143 : vector<2x1x1xf32> to vector<2x8x1xf32>
    %145 = arith.subf %141, %144 : vector<2x8x1xf32>
    %146 = math.exp %145 : vector<2x8x1xf32>
    %cst_31 = arith.constant dense<0.000000e+00> : vector<2x1xf32>
    %147 = vector.multi_reduction <add>, %146, %cst_31 [1] : vector<2x8x1xf32> to vector<2x1xf32>
    %148 = vector.shape_cast %147 : vector<2x1xf32> to vector<2x1x1xf32>
    %149 = vector.broadcast %146 : vector<2x8x1xf32> to vector<2x8x16xf32>
    %150 = arith.mulf %149, %0 : vector<2x8x16xf32>
    %cst_32 = arith.constant dense<0.000000e+00> : vector<2x16xf32>
    %151 = vector.multi_reduction <add>, %150, %cst_32 [1] : vector<2x8x16xf32> to vector<2x16xf32>
    %152 = vector.shape_cast %148 : vector<2x1x1xf32> to vector<2x1xf32>
    %153 = tpu.reciprocal %152 : vector<2x1xf32> -> vector<2x1xf32>
    %154 = vector.broadcast %153 : vector<2x1xf32> to vector<2x16xf32>
    %155 = arith.mulf %151, %154 : vector<2x16xf32>
    %156 = tpu.concatenate %136, %155 in 1 : vector<2x16xf32>, vector<2x16xf32> -> vector<2x32xf32>
    %c4_i32 = arith.constant 4 : i32
    %cst_33 = arith.constant dense<0.000000e+00> : vector<2x64xf32>
    %157 = tpu.matmul %156, %1, %cst_33 {dimension_numbers = #tpu.dot_dimension_numbers<[1], [0], [0], [1], [0, 0, 1, 1], [], []>} : vector<2x32xf32>, vector<32x64xf32>, vector<2x64xf32> -> vector<2x64xf32>
    %158 = arith.addf %157, %6 : vector<2x64xf32>
    %159 = arith.negf %158 : vector<2x64xf32>
    %160 = math.exp %159 : vector<2x64xf32>
    %cst_34 = arith.constant 1.000000e+00 : f32
    %161 = vector.broadcast %cst_34 : f32 to vector<2x64xf32>
    %162 = arith.addf %161, %160 : vector<2x64xf32>
    %163 = arith.divf %161, %162 : vector<2x64xf32>
    %164 = vector.extract_strided_slice %163 {offsets = [0, 0], sizes = [2, 16], strides = [1, 1]} : vector<2x64xf32> to vector<2x16xf32>
    %165 = vector.extract_strided_slice %163 {offsets = [0, 16], sizes = [2, 16], strides = [1, 1]} : vector<2x64xf32> to vector<2x16xf32>
    %166 = vector.extract_strided_slice %163 {offsets = [0, 48], sizes = [2, 16], strides = [1, 1]} : vector<2x64xf32> to vector<2x16xf32>
    %167 = vector.extract_strided_slice %158 {offsets = [0, 32], sizes = [2, 16], strides = [1, 1]} : vector<2x64xf32> to vector<2x16xf32>
    %168 = math.tanh %167 : vector<2x16xf32>
    %169 = arith.mulf %165, %134 : vector<2x16xf32>
    %170 = arith.mulf %164, %168 : vector<2x16xf32>
    %171 = arith.addf %169, %170 : vector<2x16xf32>
    %172 = math.tanh %171 : vector<2x16xf32>
    %173 = arith.mulf %166, %172 : vector<2x16xf32>
    %174 = vector.shape_cast %173 : vector<2x16xf32> to vector<2x1x16xf32>
    %175 = vector.broadcast %174 : vector<2x1x16xf32> to vector<2x8x16xf32>
    %176 = arith.mulf %0, %175 : vector<2x8x16xf32>
    %cst_35 = arith.constant dense<0.000000e+00> : vector<2x8xf32>
    %177 = vector.multi_reduction <add>, %176, %cst_35 [2] : vector<2x8x16xf32> to vector<2x8xf32>
    %178 = vector.shape_cast %177 : vector<2x8xf32> to vector<2x8x1xf32>
    %cst_36 = arith.constant dense<0xFF800000> : vector<2x1xf32>
    %179 = vector.multi_reduction <maximumf>, %178, %cst_36 [1] : vector<2x8x1xf32> to vector<2x1xf32>
    %180 = vector.shape_cast %179 : vector<2x1xf32> to vector<2x1x1xf32>
    %181 = vector.broadcast %180 : vector<2x1x1xf32> to vector<2x8x1xf32>
    %182 = arith.subf %178, %181 : vector<2x8x1xf32>
    %183 = math.exp %182 : vector<2x8x1xf32>
    %cst_37 = arith.constant dense<0.000000e+00> : vector<2x1xf32>
    %184 = vector.multi_reduction <add>, %183, %cst_37 [1] : vector<2x8x1xf32> to vector<2x1xf32>
    %185 = vector.shape_cast %184 : vector<2x1xf32> to vector<2x1x1xf32>
    %186 = vector.broadcast %183 : vector<2x8x1xf32> to vector<2x8x16xf32>
    %187 = arith.mulf %186, %0 : vector<2x8x16xf32>
    %cst_38 = arith.constant dense<0.000000e+00> : vector<2x16xf32>
    %188 = vector.multi_reduction <add>, %187, %cst_38 [1] : vector<2x8x16xf32> to vector<2x16xf32>
    %189 = vector.shape_cast %185 : vector<2x1x1xf32> to vector<2x1xf32>
    %190 = tpu.reciprocal %189 : vector<2x1xf32> -> vector<2x1xf32>
    %191 = vector.broadcast %190 : vector<2x1xf32> to vector<2x16xf32>
    %192 = arith.mulf %188, %191 : vector<2x16xf32>
    %193 = tpu.concatenate %173, %192 in 1 : vector<2x16xf32>, vector<2x16xf32> -> vector<2x32xf32>
    %c5_i32 = arith.constant 5 : i32
    %cst_39 = arith.constant dense<0.000000e+00> : vector<2x64xf32>
    %194 = tpu.matmul %193, %1, %cst_39 {dimension_numbers = #tpu.dot_dimension_numbers<[1], [0], [0], [1], [0, 0, 1, 1], [], []>} : vector<2x32xf32>, vector<32x64xf32>, vector<2x64xf32> -> vector<2x64xf32>
    %195 = arith.addf %194, %6 : vector<2x64xf32>
    %196 = arith.negf %195 : vector<2x64xf32>
    %197 = math.exp %196 : vector<2x64xf32>
    %cst_40 = arith.constant 1.000000e+00 : f32
    %198 = vector.broadcast %cst_40 : f32 to vector<2x64xf32>
    %199 = arith.addf %198, %197 : vector<2x64xf32>
    %200 = arith.divf %198, %199 : vector<2x64xf32>
    %201 = vector.extract_strided_slice %200 {offsets = [0, 0], sizes = [2, 16], strides = [1, 1]} : vector<2x64xf32> to vector<2x16xf32>
    %202 = vector.extract_strided_slice %200 {offsets = [0, 16], sizes = [2, 16], strides = [1, 1]} : vector<2x64xf32> to vector<2x16xf32>
    %203 = vector.extract_strided_slice %200 {offsets = [0, 48], sizes = [2, 16], strides = [1, 1]} : vector<2x64xf32> to vector<2x16xf32>
    %204 = vector.extract_strided_slice %195 {offsets = [0, 32], sizes = [2, 16], strides = [1, 1]} : vector<2x64xf32> to vector<2x16xf32>
    %205 = math.tanh %204 : vector<2x16xf32>
    %206 = arith.mulf %202, %171 : vector<2x16xf32>
    %207 = arith.mulf %201, %205 : vector<2x16xf32>
    %208 = arith.addf %206, %207 : vector<2x16xf32>
    %209 = math.tanh %208 : vector<2x16xf32>
    %210 = arith.mulf %203, %209 : vector<2x16xf32>
    %211 = vector.shape_cast %210 : vector<2x16xf32> to vector<2x1x16xf32>
    %212 = vector.broadcast %211 : vector<2x1x16xf32> to vector<2x8x16xf32>
    %213 = arith.mulf %0, %212 : vector<2x8x16xf32>
    %cst_41 = arith.constant dense<0.000000e+00> : vector<2x8xf32>
    %214 = vector.multi_reduction <add>, %213, %cst_41 [2] : vector<2x8x16xf32> to vector<2x8xf32>
    %215 = vector.shape_cast %214 : vector<2x8xf32> to vector<2x8x1xf32>
    %cst_42 = arith.constant dense<0xFF800000> : vector<2x1xf32>
    %216 = vector.multi_reduction <maximumf>, %215, %cst_42 [1] : vector<2x8x1xf32> to vector<2x1xf32>
    %217 = vector.shape_cast %216 : vector<2x1xf32> to vector<2x1x1xf32>
    %218 = vector.broadcast %217 : vector<2x1x1xf32> to vector<2x8x1xf32>
    %219 = arith.subf %215, %218 : vector<2x8x1xf32>
    %220 = math.exp %219 : vector<2x8x1xf32>
    %cst_43 = arith.constant dense<0.000000e+00> : vector<2x1xf32>
    %221 = vector.multi_reduction <add>, %220, %cst_43 [1] : vector<2x8x1xf32> to vector<2x1xf32>
    %222 = vector.shape_cast %221 : vector<2x1xf32> to vector<2x1x1xf32>
    %223 = vector.broadcast %220 : vector<2x8x1xf32> to vector<2x8x16xf32>
    %224 = arith.mulf %223, %0 : vector<2x8x16xf32>
    %cst_44 = arith.constant dense<0.000000e+00> : vector<2x16xf32>
    %225 = vector.multi_reduction <add>, %224, %cst_44 [1] : vector<2x8x16xf32> to vector<2x16xf32>
    %226 = vector.shape_cast %222 : vector<2x1x1xf32> to vector<2x1xf32>
    %227 = tpu.reciprocal %226 : vector<2x1xf32> -> vector<2x1xf32>
    %228 = vector.broadcast %227 : vector<2x1xf32> to vector<2x16xf32>
    %229 = arith.mulf %225, %228 : vector<2x16xf32>
    %230 = tpu.concatenate %210, %229 in 1 : vector<2x16xf32>, vector<2x16xf32> -> vector<2x32xf32>
    %c6_i32 = arith.constant 6 : i32
    %cst_45 = arith.constant dense<0.000000e+00> : vector<2x64xf32>
    %231 = tpu.matmul %230, %1, %cst_45 {dimension_numbers = #tpu.dot_dimension_numbers<[1], [0], [0], [1], [0, 0, 1, 1], [], []>} : vector<2x32xf32>, vector<32x64xf32>, vector<2x64xf32> -> vector<2x64xf32>
    %232 = arith.addf %231, %6 : vector<2x64xf32>
    %233 = arith.negf %232 : vector<2x64xf32>
    %234 = math.exp %233 : vector<2x64xf32>
    %cst_46 = arith.constant 1.000000e+00 : f32
    %235 = vector.broadcast %cst_46 : f32 to vector<2x64xf32>
    %236 = arith.addf %235, %234 : vector<2x64xf32>
    %237 = arith.divf %235, %236 : vector<2x64xf32>
    %238 = vector.extract_strided_slice %237 {offsets = [0, 0], sizes = [2, 16], strides = [1, 1]} : vector<2x64xf32> to vector<2x16xf32>
    %239 = vector.extract_strided_slice %237 {offsets = [0, 16], sizes = [2, 16], strides = [1, 1]} : vector<2x64xf32> to vector<2x16xf32>
    %240 = vector.extract_strided_slice %237 {offsets = [0, 48], sizes = [2, 16], strides = [1, 1]} : vector<2x64xf32> to vector<2x16xf32>
    %241 = vector.extract_strided_slice %232 {offsets = [0, 32], sizes = [2, 16], strides = [1, 1]} : vector<2x64xf32> to vector<2x16xf32>
    %242 = math.tanh %241 : vector<2x16xf32>
    %243 = arith.mulf %239, %208 : vector<2x16xf32>
    %244 = arith.mulf %238, %242 : vector<2x16xf32>
    %245 = arith.addf %243, %244 : vector<2x16xf32>
    %246 = math.tanh %245 : vector<2x16xf32>
    %247 = arith.mulf %240, %246 : vector<2x16xf32>
    %248 = vector.shape_cast %247 : vector<2x16xf32> to vector<2x1x16xf32>
    %249 = vector.broadcast %248 : vector<2x1x16xf32> to vector<2x8x16xf32>
    %250 = arith.mulf %0, %249 : vector<2x8x16xf32>
    %cst_47 = arith.constant dense<0.000000e+00> : vector<2x8xf32>
    %251 = vector.multi_reduction <add>, %250, %cst_47 [2] : vector<2x8x16xf32> to vector<2x8xf32>
    %252 = vector.shape_cast %251 : vector<2x8xf32> to vector<2x8x1xf32>
    %cst_48 = arith.constant dense<0xFF800000> : vector<2x1xf32>
    %253 = vector.multi_reduction <maximumf>, %252, %cst_48 [1] : vector<2x8x1xf32> to vector<2x1xf32>
    %254 = vector.shape_cast %253 : vector<2x1xf32> to vector<2x1x1xf32>
    %255 = vector.broadcast %254 : vector<2x1x1xf32> to vector<2x8x1xf32>
    %256 = arith.subf %252, %255 : vector<2x8x1xf32>
    %257 = math.exp %256 : vector<2x8x1xf32>
    %cst_49 = arith.constant dense<0.000000e+00> : vector<2x1xf32>
    %258 = vector.multi_reduction <add>, %257, %cst_49 [1] : vector<2x8x1xf32> to vector<2x1xf32>
    %259 = vector.shape_cast %258 : vector<2x1xf32> to vector<2x1x1xf32>
    %260 = vector.broadcast %257 : vector<2x8x1xf32> to vector<2x8x16xf32>
    %261 = arith.mulf %260, %0 : vector<2x8x16xf32>
    %cst_50 = arith.constant dense<0.000000e+00> : vector<2x16xf32>
    %262 = vector.multi_reduction <add>, %261, %cst_50 [1] : vector<2x8x16xf32> to vector<2x16xf32>
    %263 = vector.shape_cast %259 : vector<2x1x1xf32> to vector<2x1xf32>
    %264 = tpu.reciprocal %263 : vector<2x1xf32> -> vector<2x1xf32>
    %265 = vector.broadcast %264 : vector<2x1xf32> to vector<2x16xf32>
    %266 = arith.mulf %262, %265 : vector<2x16xf32>
    %267 = tpu.concatenate %247, %266 in 1 : vector<2x16xf32>, vector<2x16xf32> -> vector<2x32xf32>
    %c7_i32 = arith.constant 7 : i32
    %cst_51 = arith.constant dense<0.000000e+00> : vector<2x64xf32>
    %268 = tpu.matmul %267, %1, %cst_51 {dimension_numbers = #tpu.dot_dimension_numbers<[1], [0], [0], [1], [0, 0, 1, 1], [], []>} : vector<2x32xf32>, vector<32x64xf32>, vector<2x64xf32> -> vector<2x64xf32>
    %269 = arith.addf %268, %6 : vector<2x64xf32>
    %270 = arith.negf %269 : vector<2x64xf32>
    %271 = math.exp %270 : vector<2x64xf32>
    %cst_52 = arith.constant 1.000000e+00 : f32
    %272 = vector.broadcast %cst_52 : f32 to vector<2x64xf32>
    %273 = arith.addf %272, %271 : vector<2x64xf32>
    %274 = arith.divf %272, %273 : vector<2x64xf32>
    %275 = vector.extract_strided_slice %274 {offsets = [0, 0], sizes = [2, 16], strides = [1, 1]} : vector<2x64xf32> to vector<2x16xf32>
    %276 = vector.extract_strided_slice %274 {offsets = [0, 16], sizes = [2, 16], strides = [1, 1]} : vector<2x64xf32> to vector<2x16xf32>
    %277 = vector.extract_strided_slice %274 {offsets = [0, 48], sizes = [2, 16], strides = [1, 1]} : vector<2x64xf32> to vector<2x16xf32>
    %278 = vector.extract_strided_slice %269 {offsets = [0, 32], sizes = [2, 16], strides = [1, 1]} : vector<2x64xf32> to vector<2x16xf32>
    %279 = math.tanh %278 : vector<2x16xf32>
    %280 = arith.mulf %276, %245 : vector<2x16xf32>
    %281 = arith.mulf %275, %279 : vector<2x16xf32>
    %282 = arith.addf %280, %281 : vector<2x16xf32>
    %283 = math.tanh %282 : vector<2x16xf32>
    %284 = arith.mulf %277, %283 : vector<2x16xf32>
    %285 = vector.shape_cast %284 : vector<2x16xf32> to vector<2x1x16xf32>
    %286 = vector.broadcast %285 : vector<2x1x16xf32> to vector<2x8x16xf32>
    %287 = arith.mulf %0, %286 : vector<2x8x16xf32>
    %cst_53 = arith.constant dense<0.000000e+00> : vector<2x8xf32>
    %288 = vector.multi_reduction <add>, %287, %cst_53 [2] : vector<2x8x16xf32> to vector<2x8xf32>
    %289 = vector.shape_cast %288 : vector<2x8xf32> to vector<2x8x1xf32>
    %cst_54 = arith.constant dense<0xFF800000> : vector<2x1xf32>
    %290 = vector.multi_reduction <maximumf>, %289, %cst_54 [1] : vector<2x8x1xf32> to vector<2x1xf32>
    %291 = vector.shape_cast %290 : vector<2x1xf32> to vector<2x1x1xf32>
    %292 = vector.broadcast %291 : vector<2x1x1xf32> to vector<2x8x1xf32>
    %293 = arith.subf %289, %292 : vector<2x8x1xf32>
    %294 = math.exp %293 : vector<2x8x1xf32>
    %cst_55 = arith.constant dense<0.000000e+00> : vector<2x1xf32>
    %295 = vector.multi_reduction <add>, %294, %cst_55 [1] : vector<2x8x1xf32> to vector<2x1xf32>
    %296 = vector.shape_cast %295 : vector<2x1xf32> to vector<2x1x1xf32>
    %297 = vector.broadcast %294 : vector<2x8x1xf32> to vector<2x8x16xf32>
    %298 = arith.mulf %297, %0 : vector<2x8x16xf32>
    %cst_56 = arith.constant dense<0.000000e+00> : vector<2x16xf32>
    %299 = vector.multi_reduction <add>, %298, %cst_56 [1] : vector<2x8x16xf32> to vector<2x16xf32>
    %300 = vector.shape_cast %296 : vector<2x1x1xf32> to vector<2x1xf32>
    %301 = tpu.reciprocal %300 : vector<2x1xf32> -> vector<2x1xf32>
    %302 = vector.broadcast %301 : vector<2x1xf32> to vector<2x16xf32>
    %303 = arith.mulf %299, %302 : vector<2x16xf32>
    %304 = tpu.concatenate %284, %303 in 1 : vector<2x16xf32>, vector<2x16xf32> -> vector<2x32xf32>
    %cst_57 = arith.constant dense<0.000000e+00> : vector<2x16xf32>
    %305 = tpu.matmul %304, %2, %cst_57 {dimension_numbers = #tpu.dot_dimension_numbers<[1], [0], [0], [1], [0, 0, 1, 1], [], []>} : vector<2x32xf32>, vector<32x16xf32>, vector<2x16xf32> -> vector<2x16xf32>
    %306 = vector.broadcast %3 : vector<1x16xf32> to vector<2x16xf32>
    %307 = arith.addf %305, %306 : vector<2x16xf32>
    %cst_58 = arith.constant 0.000000e+00 : f32
    %308 = vector.broadcast %cst_58 : f32 to vector<2x16xf32>
    %309 = arith.maximumf %307, %308 : vector<2x16xf32>
    %c0_59 = arith.constant 0 : index
    %c0_60 = arith.constant 0 : index
    %310 = vector.load %arg2[%c0_59, %c0_60] : memref<2x16xf32, #tpu.memory_space<vmem>>, vector<2x16xf32>
    tpu.vector_store %arg2[%c0_59, %c0_60], %309 {strides = array<i32>} : memref<2x16xf32, #tpu.memory_space<vmem>>, vector<2x16xf32>,
    return
  }
}

</mosaic_0001>

<llo_original>
// kernel: set2set_pallas.1
$region0: #{set2set_pallas.1}
  #allocation0 [shape = 'u32[]', space=smem, size = 0x4, offset = 0x4, fixed_abs, tag = 'smem constant byte address 0x4 - core index']
  #allocation1 [shape = 'u32[144,128]{1,0:T(1,128)}', space=vmem, size = 0x12000, scoped, tag = 'internal scratch']
  %s0 = inlined_call_operand.vmem [shape: f32[2,8,16], index: 0, kind: input, shape index: {}]
  %s1 = inlined_call_operand.vmem [shape: f32[33,80], index: 1, kind: input, shape index: {}]
  %s2 = inlined_call_operand.hbm [shape: f32[2,16], index: 2, kind: output, shape index: {}]
  %s3 = sld [smem:[#allocation0]]
  $region18: #{set2set_pallas.1} parent=0
    _
  %s5 = ssub.s32 1, %s3
  %s6 = scalar_select 0, %s5, %s3
  $region1: #{set2set_pallas.1} parent=0
    #allocation2 [shape = 'u8[1024]{0}', space=vmem, size = 0x400, scoped, tag = 'output window, operand 0, single buffered']
    #allocation3 [shape = 's32[1]{0}', space=sflag, size = 0x4, scoped, tag = 'scoped memory for set2set_pallas.1']
    %7 = vsyncpa [#allocation3], 0
    // Predicated region
    $region2: #{set2set_pallas.1} parent=1 // pred_check
      _
    $region3: #{set2set_pallas.1} parent=1 // pred_check_branch
      %9 = sbr.rel (0) target = $region5
    $region4: #{set2set_pallas.1} parent=1 // pred_region
      _
    $region5: #{set2set_pallas.1} parent=1 // pred_fallthru
      _
    // Predicated region
    $region6: #{set2set_pallas.1} parent=1 // pred_check
      _
    $region7: #{set2set_pallas.1} parent=1 // pred_check_branch
      %11 = sbr.rel (0) target = $region9
    $region8: #{set2set_pallas.1} parent=1 // pred_region
      _
    $region9: #{set2set_pallas.1} parent=1 // pred_fallthru
      _
    %v12 = vld [vmem:[%s0] sm:$0xff]
    %v13 = vld [vmem:[%s0 + $0x8] sm:$0xff]
    %v14 = vld [vmem:[%s1] sm:$0xff]
    %v15 = vld [vmem:[%s1 + $0x8] sm:$0xff]
    %v16 = vld [vmem:[%s1 + $0x10] sm:$0xff]
    %v17 = vld [vmem:[%s1 + $0x18] sm:$0xff]
    %v18 = vld [vmem:[%s1 + $0x20] sm:$0x1]
    %v19 = vlaneseq
    %v20 = vshrl.u32 %v19, 7
    %v21 = vsub.s32 0, %v20
    %v22 = vrot.slane %v18, %v21
    %vm23 = vcmask 261120
    %v25 = vsel %vm23, 0.0, 0
    %27 = vmatprep.subr.mxu0 0.0
    %28 = vmatpush1.msra.mxu0 %v14
    %29 = vmatprep.subr.mxu0 0.0
    %30 = vmatpush1.msra.mxu0 %v15
    %31 = vmatprep.subr.mxu0 0.0
    %32 = vmatpush1.msra.mxu0 %v16
    %33 = vmatprep.subr.mxu0 0.0
    %34 = vmatpush1.msra.mxu0 %v17
    %35 = vmatprep.subr.mxu0 0.0
    %36 = vmatpush1.msra.mxu0 0.0
    %37 = vmatprep.subr.mxu0 0.0
    %38 = vmatpush1.msra.mxu0 0.0
    %39 = vmatprep.subr.mxu0 0.0
    %40 = vmatpush1.msra.mxu0 0.0
    %41 = vmatprep.subr.mxu0 0.0
    %42 = vmatpush1.msra.mxu0 0.0
    %43 = vmatprep.subr.mxu0 0.0
    %44 = vmatpush1.msra.mxu0 0.0
    %45 = vmatprep.subr.mxu0 0.0
    %46 = vmatpush1.msra.mxu0 0.0
    %47 = vmatprep.subr.mxu0 0.0
    %48 = vmatpush1.msra.mxu0 0.0
    %49 = vmatprep.subr.mxu0 0.0
    %50 = vmatpush1.msra.mxu0 0.0
    %51 = vmatprep.subr.mxu0 0.0
    %52 = vmatpush1.msra.mxu0 0.0
    %53 = vmatprep.subr.mxu0 0.0
    %54 = vmatpush1.msra.mxu0 0.0
    %55 = vmatprep.subr.mxu0 0.0
    %56 = vmatpush1.msra.mxu0 0.0
    %57 = vmatprep.subr.mxu0 0.0
    %58 = vmatpush1.msra.mxu0 0.0
    %59 = vmatprep.subr.mxu0 0.0
    %60 = vmatpush1.msra.mxu0 0.0
    %61 = vmatprep.subr.mxu0 0.0
    %62 = vmatpush1.msra.mxu0 0.0
    %63 = vmatprep.subr.mxu0 0.0
    %64 = vmatpush1.msra.mxu0 0.0
    %65 = vmatprep.subr.mxu0 0.0
    %66 = vmatpush1.msra.mxu0 0.0
    %67 = vmatprep.subr.mxu0 0.0
    %68 = vmatpush1.msra.mxu0 0.0
    %69 = vmatprep.subr.mxu0 0.0
    %70 = vmatpush1.msra.mxu0 0.0
    %71 = vmatprep.subr.mxu0 0.0
    %72 = vmatpush1.msra.mxu0 0.0
    %73 = vmatprep.subr.mxu0 0.0
    %74 = vmatpush1.msra.mxu0 0.0
    %75 = vmatprep.subr.mxu0 0.0
    %76 = vmatpush1.msra.mxu0 0.0
    %77 = vmatprep.subr.mxu0 0.0
    %78 = vmatpush1.msra.mxu0 0.0
    %79 = vmatprep.subr.mxu0 0.0
    %80 = vmatpush1.msra.mxu0 0.0
    %81 = vmatprep.subr.mxu0 0.0
    %82 = vmatpush1.msra.mxu0 0.0
    %83 = vmatprep.subr.mxu0 0.0
    %84 = vmatpush1.msra.mxu0 0.0
    %85 = vmatprep.subr.mxu0 0.0
    %86 = vmatpush1.msra.mxu0 0.0
    %87 = vmatprep.subr.mxu0 0.0
    %88 = vmatpush1.msra.mxu0 0.0
    %89 = vmatprep.subr.mxu0 0.0
    %90 = vmatpush1.msra.mxu0 0.0
    %91 = vmatprep.mubr.f32.mxu0 0.0
    %92 = vmatmul.mubr.f32.gmra.mrb[0].mxu0 %v25
    %v93 = vpop.f32.mrb[0].mxu0
    %v94 = vadd.f32 %v22, %v93
    %v95 = vpop.f32.mrb[0].mxu0
    %96 = vdwg.mxu0
    %v97 = vxor.u32 %v94, 2147483648
    %v98 = vmul.f32 %v97, 1.442695
    %v99 = vpow.pop %v98
    %v100 = vadd.f32 %v99, 1.0
    %v101 = vrcp.pop %v100
    %v102 = vmul.f32 1.0, %v101
    %v103 = vtanh.pop %v94
    %v104 = vmul.f32 %v102, 0.0
    %106 = vrot.lane.b32.xlu0 %v103, 96
    %v107 = vpop.permute.xlu0 %106
    %v109 = vmul.f32 %v102, %v107
    %111 = vrot.lane.b32.xlu0 %v109, 16
    %v112 = vpop.permute.xlu0 %111
    %v114 = vadd.f32 %v104, %v112
    %v115 = vtanh.pop %v114
    %117 = vrot.lane.b32.xlu0 %v115, 32
    %v118 = vpop.permute.xlu0 %117
    %v120 = vmul.f32 %v102, %v118
    %v123 = vunpack.c.l.s4 1966171168
    %v124 = vunpack.c.0.s8 %v123
    %v125 = vlaneseq
    %v126 = vshrl.u32 %v125, 7
    %v127 = vsub.s32 %v124, %v126
    %v128 = vrot.slane %v120, %v127
    %v129 = vcombine.high %v128, %v128
    %v131 = vunpack.c.l.s4 1966171168
    %v132 = vunpack.c.0.s8 %v131
    %v133 = vlaneseq
    %v134 = vshrl.u32 %v133, 7
    %v135 = vsub.s32 %v132, %v134
    %v136 = vrot.slane %v128, %v135
    %v138 = vunpack.c.l.s4 1966171168
    %v139 = vunpack.c.0.s8 %v138
    %v140 = vlaneseq
    %v141 = vshrl.u32 %v140, 7
    %v142 = vsub.s32 %v139, %v141
    %v143 = vrot.slane %v129, %v142
    %v144 = vlaneseq
    %v145 = vshrl.u32 %v144, 7
    %v146 = vsub.s32 0, %v145
    %v147 = vrot.slane %v136, %v146
    %v148 = vlaneseq
    %v149 = vshrl.u32 %v148, 7
    %v150 = vsub.s32 0, %v149
    %v151 = vrot.slane %v143, %v150
    %152 = vrot.lane.b32.xlu0 %v147, 80
    %v153 = vpop.permute.xlu0 %152
    %154 = vrot.lane.b32.xlu0 %v151, 80
    %v155 = vpop.permute.xlu0 %154
    %v158 = vmul.f32 %v12, %v153
    %v159 = vmul.f32 %v13, %v155
    %vm160 = vcmask 130048
    %v161 = vsel %vm160, %v158, 0.0
    %162 = vadd.xlane.f32.xlu0 %v161
    %v163 = vpop.xlane.xlu0 %162
    %v164 = vsel %vm160, %v159, 0.0
    %165 = vadd.xlane.f32.xlu0 %v164
    %v166 = vpop.xlane.xlu0 %165
    %v167 = vrot.slane %v163, 4
    %v168 = vmax.f32 %v163, %v167
    %v169 = vrot.slane %v168, 2
    %v170 = vmax.f32 %v168, %v169
    %v171 = vrot.slane %v170, 1
    %v172 = vmax.f32 %v170, %v171
    %v173 = vrot.slane %v166, 4
    %v174 = vmax.f32 %v166, %v173
    %v175 = vrot.slane %v174, 2
    %v176 = vmax.f32 %v174, %v175
    %v177 = vrot.slane %v176, 1
    %v178 = vmax.f32 %v176, %v177
    %v179 = vsub.f32 %v163, %v172
    %v180 = vsub.f32 %v166, %v178
    %v181 = vmul.f32 %v179, 1.442695
    %v182 = vpow.pop %v181
    %v183 = vmul.f32 %v180, 1.442695
    %v184 = vpow.pop %v183
    %v185 = vrot.slane %v182, 4
    %v186 = vadd.f32 %v182, %v185
    %v187 = vrot.slane %v186, 2
    %v188 = vadd.f32 %v186, %v187
    %v189 = vrot.slane %v188, 1
    %v190 = vadd.f32 %v188, %v189
    %v191 = vrot.slane %v184, 4
    %v192 = vadd.f32 %v184, %v191
    %v193 = vrot.slane %v192, 2
    %v194 = vadd.f32 %v192, %v193
    %v195 = vrot.slane %v194, 1
    %v196 = vadd.f32 %v194, %v195
    %v197 = vmul.f32 %v182, %v12
    %v198 = vmul.f32 %v184, %v13
    %v199 = vsel %vm160, %v197, 0.0
    %v200 = vrot.slane %v199, 4
    %v201 = vadd.f32 %v199, %v200
    %v202 = vrot.slane %v201, 2
    %v203 = vadd.f32 %v201, %v202
    %v204 = vrot.slane %v203, 1
    %v205 = vadd.f32 %v203, %v204
    %v206 = vsel %vm160, %v198, 0.0
    %v207 = vrot.slane %v206, 4
    %v208 = vadd.f32 %v206, %v207
    %v209 = vrot.slane %v208, 2
    %v210 = vadd.f32 %v208, %v209
    %v211 = vrot.slane %v210, 1
    %v212 = vadd.f32 %v210, %v211
    %v213 = vrcp.pop %v190
    %v214 = vrcp.pop %v196
    %v215 = vmul.f32 %v205, %v213
    %v216 = vmul.f32 %v212, %v214
    %217 = vrot.lane.b32.xlu0 %v120, 80
    %v218 = vpop.permute.xlu0 %217
    %vm222 = vcmask 1041409
    %v223 = vsel %vm222, %v216, %v215
    %224 = vrot.lane.b32.xlu0 %v223, 16
    %v225 = vpop.permute.xlu0 %224
    %v227 = vsel %vm160, %v218, %v225
    %v229 = vsel %vm23, %v227, 0
    %231 = vmatprep.subr.mxu0 0.0
    %232 = vmatpush1.msra.mxu0 %v14
    %233 = vmatprep.subr.mxu0 0.0
    %234 = vmatpush1.msra.mxu0 %v15
    %235 = vmatprep.subr.mxu0 0.0
    %236 = vmatpush1.msra.mxu0 %v16
    %237 = vmatprep.subr.mxu0 0.0
    %238 = vmatpush1.msra.mxu0 %v17
    %239 = vmatprep.subr.mxu0 0.0
    %240 = vmatpush1.msra.mxu0 0.0
    %241 = vmatprep.subr.mxu0 0.0
    %242 = vmatpush1.msra.mxu0 0.0
    %243 = vmatprep.subr.mxu0 0.0
    %244 = vmatpush1.msra.mxu0 0.0
    %245 = vmatprep.subr.mxu0 0.0
    %246 = vmatpush1.msra.mxu0 0.0
    %247 = vmatprep.subr.mxu0 0.0
    %248 = vmatpush1.msra.mxu0 0.0
    %249 = vmatprep.subr.mxu0 0.0
    %250 = vmatpush1.msra.mxu0 0.0
    %251 = vmatprep.subr.mxu0 0.0
    %252 = vmatpush1.msra.mxu0 0.0
    %253 = vmatprep.subr.mxu0 0.0
    %254 = vmatpush1.msra.mxu0 0.0
    %255 = vmatprep.subr.mxu0 0.0
    %256 = vmatpush1.msra.mxu0 0.0
    %257 = vmatprep.subr.mxu0 0.0
    %258 = vmatpush1.msra.mxu0 0.0
    %259 = vmatprep.subr.mxu0 0.0
    %260 = vmatpush1.msra.mxu0 0.0
    %261 = vmatprep.subr.mxu0 0.0
    %262 = vmatpush1.msra.mxu0 0.0
    %263 = vmatprep.subr.mxu0 0.0
    %264 = vmatpush1.msra.mxu0 0.0
    %265 = vmatprep.subr.mxu0 0.0
    %266 = vmatpush1.msra.mxu0 0.0
    %267 = vmatprep.subr.mxu0 0.0
    %268 = vmatpush1.msra.mxu0 0.0
    %269 = vmatprep.subr.mxu0 0.0
    %270 = vmatpush1.msra.mxu0 0.0
    %271 = vmatprep.subr.mxu0 0.0
    %272 = vmatpush1.msra.mxu0 0.0
    %273 = vmatprep.subr.mxu0 0.0
    %274 = vmatpush1.msra.mxu0 0.0
    %275 = vmatprep.subr.mxu0 0.0
    %276 = vmatpush1.msra.mxu0 0.0
    %277 = vmatprep.subr.mxu0 0.0
    %278 = vmatpush1.msra.mxu0 0.0
    %279 = vmatprep.subr.mxu0 0.0
    %280 = vmatpush1.msra.mxu0 0.0
    %281 = vmatprep.subr.mxu0 0.0
    %282 = vmatpush1.msra.mxu0 0.0
    %283 = vmatprep.subr.mxu0 0.0
    %284 = vmatpush1.msra.mxu0 0.0
    %285 = vmatprep.subr.mxu0 0.0
    %286 = vmatpush1.msra.mxu0 0.0
    %287 = vmatprep.subr.mxu0 0.0
    %288 = vmatpush1.msra.mxu0 0.0
    %289 = vmatprep.subr.mxu0 0.0
    %290 = vmatpush1.msra.mxu0 0.0
    %291 = vmatprep.subr.mxu0 0.0
    %292 = vmatpush1.msra.mxu0 0.0
    %293 = vmatprep.subr.mxu0 0.0
    %294 = vmatpush1.msra.mxu0 0.0
    %295 = vmatprep.mubr.f32.mxu0 0.0
    %296 = vmatmul.mubr.f32.gmra.mrb[0].mxu0 %v229
    %v297 = vpop.f32.mrb[0].mxu0
    %v298 = vadd.f32 %v22, %v297
    %v299 = vpop.f32.mrb[0].mxu0
    %300 = vdwg.mxu0
    %v301 = vxor.u32 %v298, 2147483648
    %v302 = vmul.f32 %v301, 1.442695
    %v303 = vpow.pop %v302
    %v304 = vadd.f32 %v303, 1.0
    %v305 = vrcp.pop %v304
    %v306 = vmul.f32 1.0, %v305
    %v307 = vtanh.pop %v298
    %v308 = vmul.f32 %v306, %v114
    %310 = vrot.lane.b32.xlu0 %v307, 96
    %v311 = vpop.permute.xlu0 %310
    %v313 = vmul.f32 %v306, %v311
    %315 = vrot.lane.b32.xlu0 %v313, 16
    %v316 = vpop.permute.xlu0 %315
    %v318 = vadd.f32 %v308, %v316
    %v319 = vtanh.pop %v318
    %321 = vrot.lane.b32.xlu0 %v319, 32
    %v322 = vpop.permute.xlu0 %321
    %v324 = vmul.f32 %v306, %v322
    %v327 = vunpack.c.l.s4 1966171168
    %v328 = vunpack.c.0.s8 %v327
    %v329 = vlaneseq
    %v330 = vshrl.u32 %v329, 7
    %v331 = vsub.s32 %v328, %v330
    %v332 = vrot.slane %v324, %v331
    %v333 = vcombine.high %v332, %v332
    %v335 = vunpack.c.l.s4 1966171168
    %v336 = vunpack.c.0.s8 %v335
    %v337 = vlaneseq
    %v338 = vshrl.u32 %v337, 7
    %v339 = vsub.s32 %v336, %v338
    %v340 = vrot.slane %v332, %v339
    %v342 = vunpack.c.l.s4 1966171168
    %v343 = vunpack.c.0.s8 %v342
    %v344 = vlaneseq
    %v345 = vshrl.u32 %v344, 7
    %v346 = vsub.s32 %v343, %v345
    %v347 = vrot.slane %v333, %v346
    %v348 = vlaneseq
    %v349 = vshrl.u32 %v348, 7
    %v350 = vsub.s32 0, %v349
    %v351 = vrot.slane %v340, %v350
    %v352 = vlaneseq
    %v353 = vshrl.u32 %v352, 7
    %v354 = vsub.s32 0, %v353
    %v355 = vrot.slane %v347, %v354
    %356 = vrot.lane.b32.xlu0 %v351, 80
    %v357 = vpop.permute.xlu0 %356
    %358 = vrot.lane.b32.xlu0 %v355, 80
    %v359 = vpop.permute.xlu0 %358
    %v362 = vmul.f32 %v12, %v357
    %v363 = vmul.f32 %v13, %v359
    %v364 = vsel %vm160, %v362, 0.0
    %365 = vadd.xlane.f32.xlu0 %v364
    %v366 = vpop.xlane.xlu0 %365
    %v367 = vsel %vm160, %v363, 0.0
    %368 = vadd.xlane.f32.xlu0 %v367
    %v369 = vpop.xlane.xlu0 %368
    %v370 = vrot.slane %v366, 4
    %v371 = vmax.f32 %v366, %v370
    %v372 = vrot.slane %v371, 2
    %v373 = vmax.f32 %v371, %v372
    %v374 = vrot.slane %v373, 1
    %v375 = vmax.f32 %v373, %v374
    %v376 = vrot.slane %v369, 4
    %v377 = vmax.f32 %v369, %v376
    %v378 = vrot.slane %v377, 2
    %v379 = vmax.f32 %v377, %v378
    %v380 = vrot.slane %v379, 1
    %v381 = vmax.f32 %v379, %v380
    %v382 = vsub.f32 %v366, %v375
    %v383 = vsub.f32 %v369, %v381
    %v384 = vmul.f32 %v382, 1.442695
    %v385 = vpow.pop %v384
    %v386 = vmul.f32 %v383, 1.442695
    %v387 = vpow.pop %v386
    %v388 = vrot.slane %v385, 4
    %v389 = vadd.f32 %v385, %v388
    %v390 = vrot.slane %v389, 2
    %v391 = vadd.f32 %v389, %v390
    %v392 = vrot.slane %v391, 1
    %v393 = vadd.f32 %v391, %v392
    %v394 = vrot.slane %v387, 4
    %v395 = vadd.f32 %v387, %v394
    %v396 = vrot.slane %v395, 2
    %v397 = vadd.f32 %v395, %v396
    %v398 = vrot.slane %v397, 1
    %v399 = vadd.f32 %v397, %v398
    %v400 = vmul.f32 %v385, %v12
    %v401 = vmul.f32 %v387, %v13
    %v402 = vsel %vm160, %v400, 0.0
    %v403 = vrot.slane %v402, 4
    %v404 = vadd.f32 %v402, %v403
    %v405 = vrot.slane %v404, 2
    %v406 = vadd.f32 %v404, %v405
    %v407 = vrot.slane %v406, 1
    %v408 = vadd.f32 %v406, %v407
    %v409 = vsel %vm160, %v401, 0.0
    %v410 = vrot.slane %v409, 4
    %v411 = vadd.f32 %v409, %v410
    %v412 = vrot.slane %v411, 2
    %v413 = vadd.f32 %v411, %v412
    %v414 = vrot.slane %v413, 1
    %v415 = vadd.f32 %v413, %v414
    %v416 = vrcp.pop %v393
    %v417 = vrcp.pop %v399
    %v418 = vmul.f32 %v408, %v416
    %v419 = vmul.f32 %v415, %v417
    %420 = vrot.lane.b32.xlu0 %v324, 80
    %v421 = vpop.permute.xlu0 %420
    %v425 = vsel %vm222, %v419, %v418
    %426 = vrot.lane.b32.xlu0 %v425, 16
    %v427 = vpop.permute.xlu0 %426
    %v429 = vsel %vm160, %v421, %v427
    %v431 = vsel %vm23, %v429, 0
    %433 = vmatprep.subr.mxu0 0.0
    %434 = vmatpush1.msra.mxu0 %v14
    %435 = vmatprep.subr.mxu0 0.0
    %436 = vmatpush1.msra.mxu0 %v15
    %437 = vmatprep.subr.mxu0 0.0
    %438 = vmatpush1.msra.mxu0 %v16
    %439 = vmatprep.subr.mxu0 0.0
    %440 = vmatpush1.msra.mxu0 %v17
    %441 = vmatprep.subr.mxu0 0.0
    %442 = vmatpush1.msra.mxu0 0.0
    %443 = vmatprep.subr.mxu0 0.0
    %444 = vmatpush1.msra.mxu0 0.0
    %445 = vmatprep.subr.mxu0 0.0
    %446 = vmatpush1.msra.mxu0 0.0
    %447 = vmatprep.subr.mxu0 0.0
    %448 = vmatpush1.msra.mxu0 0.0
    %449 = vmatprep.subr.mxu0 0.0
    %450 = vmatpush1.msra.mxu0 0.0
    %451 = vmatprep.subr.mxu0 0.0
    %452 = vmatpush1.msra.mxu0 0.0
    %453 = vmatprep.subr.mxu0 0.0
    %454 = vmatpush1.msra.mxu0 0.0
    %455 = vmatprep.subr.mxu0 0.0
    %456 = vmatpush1.msra.mxu0 0.0
    %457 = vmatprep.subr.mxu0 0.0
    %458 = vmatpush1.msra.mxu0 0.0
    %459 = vmatprep.subr.mxu0 0.0
    %460 = vmatpush1.msra.mxu0 0.0
    %461 = vmatprep.subr.mxu0 0.0
    %462 = vmatpush1.msra.mxu0 0.0
    %463 = vmatprep.subr.mxu0 0.0
    %464 = vmatpush1.msra.mxu0 0.0
    %465 = vmatprep.subr.mxu0 0.0
    %466 = vmatpush1.msra.mxu0 0.0
    %467 = vmatprep.subr.mxu0 0.0
    %468 = vmatpush1.msra.mxu0 0.0
    %469 = vmatprep.subr.mxu0 0.0
    %470 = vmatpush1.msra.mxu0 0.0
    %471 = vmatprep.subr.mxu0 0.0
    %472 = vmatpush1.msra.mxu0 0.0
    %473 = vmatprep.subr.mxu0 0.0
    %474 = vmatpush1.msra.mxu0 0.0
    %475 = vmatprep.subr.mxu0 0.0
    %476 = vmatpush1.msra.mxu0 0.0
    %477 = vmatprep.subr.mxu0 0.0
    %478 = vmatpush1.msra.mxu0 0.0
    %479 = vmatprep.subr.mxu0 0.0
    %480 = vmatpush1.msra.mxu0 0.0
    %481 = vmatprep.subr.mxu0 0.0
    %482 = vmatpush1.msra.mxu0 0.0
    %483 = vmatprep.subr.mxu0 0.0
    %484 = vmatpush1.msra.mxu0 0.0
    %485 = vmatprep.subr.mxu0 0.0
    %486 = vmatpush1.msra.mxu0 0.0
    %487 = vmatprep.subr.mxu0 0.0
    %488 = vmatpush1.msra.mxu0 0.0
    %489 = vmatprep.subr.mxu0 0.0
    %490 = vmatpush1.msra.mxu0 0.0
    %491 = vmatprep.subr.mxu0 0.0
    %492 = vmatpush1.msra.mxu0 0.0
    %493 = vmatprep.subr.mxu0 0.0
    %494 = vmatpush1.msra.mxu0 0.0
    %495 = vmatprep.subr.mxu0 0.0
    %496 = vmatpush1.msra.mxu0 0.0
    %497 = vmatprep.mubr.f32.mxu0 0.0
    %498 = vmatmul.mubr.f32.gmra.mrb[0].mxu0 %v431
    %v499 = vpop.f32.mrb[0].mxu0
    %v500 = vadd.f32 %v22, %v499
    %v501 = vpop.f32.mrb[0].mxu0
    %502 = vdwg.mxu0
    %v503 = vxor.u32 %v500, 2147483648
    %v504 = vmul.f32 %v503, 1.442695
    %v505 = vpow.pop %v504
    %v506 = vadd.f32 %v505, 1.0
    %v507 = vrcp.pop %v506
    %v508 = vmul.f32 1.0, %v507
    %v509 = vtanh.pop %v500
    %v510 = vmul.f32 %v508, %v318
    %512 = vrot.lane.b32.xlu0 %v509, 96
    %v513 = vpop.permute.xlu0 %512
    %v515 = vmul.f32 %v508, %v513
    %517 = vrot.lane.b32.xlu0 %v515, 16
    %v518 = vpop.permute.xlu0 %517
    %v520 = vadd.f32 %v510, %v518
    %v521 = vtanh.pop %v520
    %523 = vrot.lane.b32.xlu0 %v521, 32
    %v524 = vpop.permute.xlu0 %523
    %v526 = vmul.f32 %v508, %v524
    %v529 = vunpack.c.l.s4 1966171168
    %v530 = vunpack.c.0.s8 %v529
    %v531 = vlaneseq
    %v532 = vshrl.u32 %v531, 7
    %v533 = vsub.s32 %v530, %v532
    %v534 = vrot.slane %v526, %v533
    %v535 = vcombine.high %v534, %v534
    %v537 = vunpack.c.l.s4 1966171168
    %v538 = vunpack.c.0.s8 %v537
    %v539 = vlaneseq
    %v540 = vshrl.u32 %v539, 7
    %v541 = vsub.s32 %v538, %v540
    %v542 = vrot.slane %v534, %v541
    %v544 = vunpack.c.l.s4 1966171168
    %v545 = vunpack.c.0.s8 %v544
    %v546 = vlaneseq
    %v547 = vshrl.u32 %v546, 7
    %v548 = vsub.s32 %v545, %v547
    %v549 = vrot.slane %v535, %v548
    %v550 = vlaneseq
    %v551 = vshrl.u32 %v550, 7
    %v552 = vsub.s32 0, %v551
    %v553 = vrot.slane %v542, %v552
    %v554 = vlaneseq
    %v555 = vshrl.u32 %v554, 7
    %v556 = vsub.s32 0, %v555
    %v557 = vrot.slane %v549, %v556
    %558 = vrot.lane.b32.xlu0 %v553, 80
    %v559 = vpop.permute.xlu0 %558
    %560 = vrot.lane.b32.xlu0 %v557, 80
    %v561 = vpop.permute.xlu0 %560
    %v564 = vmul.f32 %v12, %v559
    %v565 = vmul.f32 %v13, %v561
    %v566 = vsel %vm160, %v564, 0.0
    %567 = vadd.xlane.f32.xlu0 %v566
    %v568 = vpop.xlane.xlu0 %567
    %v569 = vsel %vm160, %v565, 0.0
    %570 = vadd.xlane.f32.xlu0 %v569
    %v571 = vpop.xlane.xlu0 %570
    %v572 = vrot.slane %v568, 4
    %v573 = vmax.f32 %v568, %v572
    %v574 = vrot.slane %v573, 2
    %v575 = vmax.f32 %v573, %v574
    %v576 = vrot.slane %v575, 1
    %v577 = vmax.f32 %v575, %v576
    %v578 = vrot.slane %v571, 4
    %v579 = vmax.f32 %v571, %v578
    %v580 = vrot.slane %v579, 2
    %v581 = vmax.f32 %v579, %v580
    %v582 = vrot.slane %v581, 1
    %v583 = vmax.f32 %v581, %v582
    %v584 = vsub.f32 %v568, %v577
    %v585 = vsub.f32 %v571, %v583
    %v586 = vmul.f32 %v584, 1.442695
    %v587 = vpow.pop %v586
    %v588 = vmul.f32 %v585, 1.442695
    %v589 = vpow.pop %v588
    %v590 = vrot.slane %v587, 4
    %v591 = vadd.f32 %v587, %v590
    %v592 = vrot.slane %v591, 2
    %v593 = vadd.f32 %v591, %v592
    %v594 = vrot.slane %v593, 1
    %v595 = vadd.f32 %v593, %v594
    %v596 = vrot.slane %v589, 4
    %v597 = vadd.f32 %v589, %v596
    %v598 = vrot.slane %v597, 2
    %v599 = vadd.f32 %v597, %v598
    %v600 = vrot.slane %v599, 1
    %v601 = vadd.f32 %v599, %v600
    %v602 = vmul.f32 %v587, %v12
    %v603 = vmul.f32 %v589, %v13
    %v604 = vsel %vm160, %v602, 0.0
    %v605 = vrot.slane %v604, 4
    %v606 = vadd.f32 %v604, %v605
    %v607 = vrot.slane %v606, 2
    %v608 = vadd.f32 %v606, %v607
    %v609 = vrot.slane %v608, 1
    %v610 = vadd.f32 %v608, %v609
    %v611 = vsel %vm160, %v603, 0.0
    %v612 = vrot.slane %v611, 4
    %v613 = vadd.f32 %v611, %v612
    %v614 = vrot.slane %v613, 2
    %v615 = vadd.f32 %v613, %v614
    %v616 = vrot.slane %v615, 1
    %v617 = vadd.f32 %v615, %v616
    %v618 = vrcp.pop %v595
    %v619 = vrcp.pop %v601
    %v620 = vmul.f32 %v610, %v618
    %v621 = vmul.f32 %v617, %v619
    %622 = vrot.lane.b32.xlu0 %v526, 80
    %v623 = vpop.permute.xlu0 %622
    %v627 = vsel %vm222, %v621, %v620
    %628 = vrot.lane.b32.xlu0 %v627, 16
    %v629 = vpop.permute.xlu0 %628
    %v631 = vsel %vm160, %v623, %v629
    %v633 = vsel %vm23, %v631, 0
    %635 = vmatprep.subr.mxu0 0.0
    %636 = vmatpush1.msra.mxu0 %v14
    %637 = vmatprep.subr.mxu0 0.0
    %638 = vmatpush1.msra.mxu0 %v15
    %639 = vmatprep.subr.mxu0 0.0
    %640 = vmatpush1.msra.mxu0 %v16
    %641 = vmatprep.subr.mxu0 0.0
    %642 = vmatpush1.msra.mxu0 %v17
    %643 = vmatprep.subr.mxu0 0.0
    %644 = vmatpush1.msra.mxu0 0.0
    %645 = vmatprep.subr.mxu0 0.0
    %646 = vmatpush1.msra.mxu0 0.0
    %647 = vmatprep.subr.mxu0 0.0
    %648 = vmatpush1.msra.mxu0 0.0
    %649 = vmatprep.subr.mxu0 0.0
    %650 = vmatpush1.msra.mxu0 0.0
    %651 = vmatprep.subr.mxu0 0.0
    %652 = vmatpush1.msra.mxu0 0.0
    %653 = vmatprep.subr.mxu0 0.0
    %654 = vmatpush1.msra.mxu0 0.0
    %655 = vmatprep.subr.mxu0 0.0
    %656 = vmatpush1.msra.mxu0 0.0
    %657 = vmatprep.subr.mxu0 0.0
    %658 = vmatpush1.msra.mxu0 0.0
    %659 = vmatprep.subr.mxu0 0.0
    %660 = vmatpush1.msra.mxu0 0.0
    %661 = vmatprep.subr.mxu0 0.0
    %662 = vmatpush1.msra.mxu0 0.0
    %663 = vmatprep.subr.mxu0 0.0
    %664 = vmatpush1.msra.mxu0 0.0
    %665 = vmatprep.subr.mxu0 0.0
    %666 = vmatpush1.msra.mxu0 0.0
    %667 = vmatprep.subr.mxu0 0.0
    %668 = vmatpush1.msra.mxu0 0.0
    %669 = vmatprep.subr.mxu0 0.0
    %670 = vmatpush1.msra.mxu0 0.0
    %671 = vmatprep.subr.mxu0 0.0
    %672 = vmatpush1.msra.mxu0 0.0
    %673 = vmatprep.subr.mxu0 0.0
    %674 = vmatpush1.msra.mxu0 0.0
    %675 = vmatprep.subr.mxu0 0.0
    %676 = vmatpush1.msra.mxu0 0.0
    %677 = vmatprep.subr.mxu0 0.0
    %678 = vmatpush1.msra.mxu0 0.0
    %679 = vmatprep.subr.mxu0 0.0
    %680 = vmatpush1.msra.mxu0 0.0
    %681 = vmatprep.subr.mxu0 0.0
    %682 = vmatpush1.msra.mxu0 0.0
    %683 = vmatprep.subr.mxu0 0.0
    %684 = vmatpush1.msra.mxu0 0.0
    %685 = vmatprep.subr.mxu0 0.0
    %686 = vmatpush1.msra.mxu0 0.0
    %687 = vmatprep.subr.mxu0 0.0
    %688 = vmatpush1.msra.mxu0 0.0
    %689 = vmatprep.subr.mxu0 0.0
    %690 = vmatpush1.msra.mxu0 0.0
    %691 = vmatprep.subr.mxu0 0.0
    %692 = vmatpush1.msra.mxu0 0.0
    %693 = vmatprep.subr.mxu0 0.0
    %694 = vmatpush1.msra.mxu0 0.0
    %695 = vmatprep.subr.mxu0 0.0
    %696 = vmatpush1.msra.mxu0 0.0
    %697 = vmatprep.subr.mxu0 0.0
    %698 = vmatpush1.msra.mxu0 0.0
    %699 = vmatprep.mubr.f32.mxu0 0.0
    %700 = vmatmul.mubr.f32.gmra.mrb[0].mxu0 %v633
    %v701 = vpop.f32.mrb[0].mxu0
    %v702 = vadd.f32 %v22, %v701
    %v703 = vpop.f32.mrb[0].mxu0
    %704 = vdwg.mxu0
    %v705 = vxor.u32 %v702, 2147483648
    %v706 = vmul.f32 %v705, 1.442695
    %v707 = vpow.pop %v706
    %v708 = vadd.f32 %v707, 1.0
    %v709 = vrcp.pop %v708
    %v710 = vmul.f32 1.0, %v709
    %v711 = vtanh.pop %v702
    %v712 = vmul.f32 %v710, %v520
    %714 = vrot.lane.b32.xlu0 %v711, 96
    %v715 = vpop.permute.xlu0 %714
    %v717 = vmul.f32 %v710, %v715
    %719 = vrot.lane.b32.xlu0 %v717, 16
    %v720 = vpop.permute.xlu0 %719
    %v722 = vadd.f32 %v712, %v720
    %v723 = vtanh.pop %v722
    %725 = vrot.lane.b32.xlu0 %v723, 32
    %v726 = vpop.permute.xlu0 %725
    %v728 = vmul.f32 %v710, %v726
    %v731 = vunpack.c.l.s4 1966171168
    %v732 = vunpack.c.0.s8 %v731
    %v733 = vlaneseq
    %v734 = vshrl.u32 %v733, 7
    %v735 = vsub.s32 %v732, %v734
    %v736 = vrot.slane %v728, %v735
    %v737 = vcombine.high %v736, %v736
    %v739 = vunpack.c.l.s4 1966171168
    %v740 = vunpack.c.0.s8 %v739
    %v741 = vlaneseq
    %v742 = vshrl.u32 %v741, 7
    %v743 = vsub.s32 %v740, %v742
    %v744 = vrot.slane %v736, %v743
    %v746 = vunpack.c.l.s4 1966171168
    %v747 = vunpack.c.0.s8 %v746
    %v748 = vlaneseq
    %v749 = vshrl.u32 %v748, 7
    %v750 = vsub.s32 %v747, %v749
    %v751 = vrot.slane %v737, %v750
    %v752 = vlaneseq
    %v753 = vshrl.u32 %v752, 7
    %v754 = vsub.s32 0, %v753
    %v755 = vrot.slane %v744, %v754
    %v756 = vlaneseq
    %v757 = vshrl.u32 %v756, 7
    %v758 = vsub.s32 0, %v757
    %v759 = vrot.slane %v751, %v758
    %760 = vrot.lane.b32.xlu0 %v755, 80
    %v761 = vpop.permute.xlu0 %760
    %762 = vrot.lane.b32.xlu0 %v759, 80
    %v763 = vpop.permute.xlu0 %762
    %v766 = vmul.f32 %v12, %v761
    %v767 = vmul.f32 %v13, %v763
    %v768 = vsel %vm160, %v766, 0.0
    %769 = vadd.xlane.f32.xlu0 %v768
    %v770 = vpop.xlane.xlu0 %769
    %v771 = vsel %vm160, %v767, 0.0
    %772 = vadd.xlane.f32.xlu0 %v771
    %v773 = vpop.xlane.xlu0 %772
    %v774 = vrot.slane %v770, 4
    %v775 = vmax.f32 %v770, %v774
    %v776 = vrot.slane %v775, 2
    %v777 = vmax.f32 %v775, %v776
    %v778 = vrot.slane %v777, 1
    %v779 = vmax.f32 %v777, %v778
    %v780 = vrot.slane %v773, 4
    %v781 = vmax.f32 %v773, %v780
    %v782 = vrot.slane %v781, 2
    %v783 = vmax.f32 %v781, %v782
    %v784 = vrot.slane %v783, 1
    %v785 = vmax.f32 %v783, %v784
    %v786 = vsub.f32 %v770, %v779
    %v787 = vsub.f32 %v773, %v785
    %v788 = vmul.f32 %v786, 1.442695
    %v789 = vpow.pop %v788
    %v790 = vmul.f32 %v787, 1.442695
    %v791 = vpow.pop %v790
    %v792 = vrot.slane %v789, 4
    %v793 = vadd.f32 %v789, %v792
    %v794 = vrot.slane %v793, 2
    %v795 = vadd.f32 %v793, %v794
    %v796 = vrot.slane %v795, 1
    %v797 = vadd.f32 %v795, %v796
    %v798 = vrot.slane %v791, 4
    %v799 = vadd.f32 %v791, %v798
    %v800 = vrot.slane %v799, 2
    %v801 = vadd.f32 %v799, %v800
    %v802 = vrot.slane %v801, 1
    %v803 = vadd.f32 %v801, %v802
    %v804 = vmul.f32 %v789, %v12
    %v805 = vmul.f32 %v791, %v13
    %v806 = vsel %vm160, %v804, 0.0
    %v807 = vrot.slane %v806, 4
    %v808 = vadd.f32 %v806, %v807
    %v809 = vrot.slane %v808, 2
    %v810 = vadd.f32 %v808, %v809
    %v811 = vrot.slane %v810, 1
    %v812 = vadd.f32 %v810, %v811
    %v813 = vsel %vm160, %v805, 0.0
    %v814 = vrot.slane %v813, 4
    %v815 = vadd.f32 %v813, %v814
    %v816 = vrot.slane %v815, 2
    %v817 = vadd.f32 %v815, %v816
    %v818 = vrot.slane %v817, 1
    %v819 = vadd.f32 %v817, %v818
    %v820 = vrcp.pop %v797
    %v821 = vrcp.pop %v803
    %v822 = vmul.f32 %v812, %v820
    %v823 = vmul.f32 %v819, %v821
    %824 = vrot.lane.b32.xlu0 %v728, 80
    %v825 = vpop.permute.xlu0 %824
    %v829 = vsel %vm222, %v823, %v822
    %830 = vrot.lane.b32.xlu0 %v829, 16
    %v831 = vpop.permute.xlu0 %830
    %v833 = vsel %vm160, %v825, %v831
    %v835 = vsel %vm23, %v833, 0
    %837 = vmatprep.subr.mxu0 0.0
    %838 = vmatpush1.msra.mxu0 %v14
    %839 = vmatprep.subr.mxu0 0.0
    %840 = vmatpush1.msra.mxu0 %v15
    %841 = vmatprep.subr.mxu0 0.0
    %842 = vmatpush1.msra.mxu0 %v16
    %843 = vmatprep.subr.mxu0 0.0
    %844 = vmatpush1.msra.mxu0 %v17
    %845 = vmatprep.subr.mxu0 0.0
    %846 = vmatpush1.msra.mxu0 0.0
    %847 = vmatprep.subr.mxu0 0.0
    %848 = vmatpush1.msra.mxu0 0.0
    %849 = vmatprep.subr.mxu0 0.0
    %850 = vmatpush1.msra.mxu0 0.0
    %851 = vmatprep.subr.mxu0 0.0
    %852 = vmatpush1.msra.mxu0 0.0
    %853 = vmatprep.subr.mxu0 0.0
    %854 = vmatpush1.msra.mxu0 0.0
    %855 = vmatprep.subr.mxu0 0.0
    %856 = vmatpush1.msra.mxu0 0.0
    %857 = vmatprep.subr.mxu0 0.0
    %858 = vmatpush1.msra.mxu0 0.0
    %859 = vmatprep.subr.mxu0 0.0
    %860 = vmatpush1.msra.mxu0 0.0
    %861 = vmatprep.subr.mxu0 0.0
    %862 = vmatpush1.msra.mxu0 0.0
    %863 = vmatprep.subr.mxu0 0.0
    %864 = vmatpush1.msra.mxu0 0.0
    %865 = vmatprep.subr.mxu0 0.0
    %866 = vmatpush1.msra.mxu0 0.0
    %867 = vmatprep.subr.mxu0 0.0
    %868 = vmatpush1.msra.mxu0 0.0
    %869 = vmatprep.subr.mxu0 0.0
    %870 = vmatpush1.msra.mxu0 0.0
    %871 = vmatprep.subr.mxu0 0.0
    %872 = vmatpush1.msra.mxu0 0.0
    %873 = vmatprep.subr.mxu0 0.0
    %874 = vmatpush1.msra.mxu0 0.0
    %875 = vmatprep.subr.mxu0 0.0
    %876 = vmatpush1.msra.mxu0 0.0
    %877 = vmatprep.subr.mxu0 0.0
    %878 = vmatpush1.msra.mxu0 0.0
    %879 = vmatprep.subr.mxu0 0.0
    %880 = vmatpush1.msra.mxu0 0.0
    %881 = vmatprep.subr.mxu0 0.0
    %882 = vmatpush1.msra.mxu0 0.0
    %883 = vmatprep.subr.mxu0 0.0
    %884 = vmatpush1.msra.mxu0 0.0
    %885 = vmatprep.subr.mxu0 0.0
    %886 = vmatpush1.msra.mxu0 0.0
    %887 = vmatprep.subr.mxu0 0.0
    %888 = vmatpush1.msra.mxu0 0.0
    %889 = vmatprep.subr.mxu0 0.0
    %890 = vmatpush1.msra.mxu0 0.0
    %891 = vmatprep.subr.mxu0 0.0
    %892 = vmatpush1.msra.mxu0 0.0
    %893 = vmatprep.subr.mxu0 0.0
    %894 = vmatpush1.msra.mxu0 0.0
    %895 = vmatprep.subr.mxu0 0.0
    %896 = vmatpush1.msra.mxu0 0.0
    %897 = vmatprep.subr.mxu0 0.0
    %898 = vmatpush1.msra.mxu0 0.0
    %899 = vmatprep.subr.mxu0 0.0
    %900 = vmatpush1.msra.mxu0 0.0
    %901 = vmatprep.mubr.f32.mxu0 0.0
    %902 = vmatmul.mubr.f32.gmra.mrb[0].mxu0 %v835
    %v903 = vpop.f32.mrb[0].mxu0
    %v904 = vadd.f32 %v22, %v903
    %v905 = vpop.f32.mrb[0].mxu0
    %906 = vdwg.mxu0
    %v907 = vxor.u32 %v904, 2147483648
    %v908 = vmul.f32 %v907, 1.442695
    %v909 = vpow.pop %v908
    %v910 = vadd.f32 %v909, 1.0
    %v911 = vrcp.pop %v910
    %v912 = vmul.f32 1.0, %v911
    %v913 = vtanh.pop %v904
    %v914 = vmul.f32 %v912, %v722
    %916 = vrot.lane.b32.xlu0 %v913, 96
    %v917 = vpop.permute.xlu0 %916
    %v919 = vmul.f32 %v912, %v917
    %921 = vrot.lane.b32.xlu0 %v919, 16
    %v922 = vpop.permute.xlu0 %921
    %v924 = vadd.f32 %v914, %v922
    %v925 = vtanh.pop %v924
    %927 = vrot.lane.b32.xlu0 %v925, 32
    %v928 = vpop.permute.xlu0 %927
    %v930 = vmul.f32 %v912, %v928
    %v933 = vunpack.c.l.s4 1966171168
    %v934 = vunpack.c.0.s8 %v933
    %v935 = vlaneseq
    %v936 = vshrl.u32 %v935, 7
    %v937 = vsub.s32 %v934, %v936
    %v938 = vrot.slane %v930, %v937
    %v939 = vcombine.high %v938, %v938
    %v941 = vunpack.c.l.s4 1966171168
    %v942 = vunpack.c.0.s8 %v941
    %v943 = vlaneseq
    %v944 = vshrl.u32 %v943, 7
    %v945 = vsub.s32 %v942, %v944
    %v946 = vrot.slane %v938, %v945
    %v948 = vunpack.c.l.s4 1966171168
    %v949 = vunpack.c.0.s8 %v948
    %v950 = vlaneseq
    %v951 = vshrl.u32 %v950, 7
    %v952 = vsub.s32 %v949, %v951
    %v953 = vrot.slane %v939, %v952
    %v954 = vlaneseq
    %v955 = vshrl.u32 %v954, 7
    %v956 = vsub.s32 0, %v955
    %v957 = vrot.slane %v946, %v956
    %v958 = vlaneseq
    %v959 = vshrl.u32 %v958, 7
    %v960 = vsub.s32 0, %v959
    %v961 = vrot.slane %v953, %v960
    %962 = vrot.lane.b32.xlu0 %v957, 80
    %v963 = vpop.permute.xlu0 %962
    %964 = vrot.lane.b32.xlu0 %v961, 80
    %v965 = vpop.permute.xlu0 %964
    %v968 = vmul.f32 %v12, %v963
    %v969 = vmul.f32 %v13, %v965
    %v970 = vsel %vm160, %v968, 0.0
    %971 = vadd.xlane.f32.xlu0 %v970
    %v972 = vpop.xlane.xlu0 %971
    %v973 = vsel %vm160, %v969, 0.0
    %974 = vadd.xlane.f32.xlu0 %v973
    %v975 = vpop.xlane.xlu0 %974
    %v976 = vrot.slane %v972, 4
    %v977 = vmax.f32 %v972, %v976
    %v978 = vrot.slane %v977, 2
    %v979 = vmax.f32 %v977, %v978
    %v980 = vrot.slane %v979, 1
    %v981 = vmax.f32 %v979, %v980
    %v982 = vrot.slane %v975, 4
    %v983 = vmax.f32 %v975, %v982
    %v984 = vrot.slane %v983, 2
    %v985 = vmax.f32 %v983, %v984
    %v986 = vrot.slane %v985, 1
    %v987 = vmax.f32 %v985, %v986
    %v988 = vsub.f32 %v972, %v981
    %v989 = vsub.f32 %v975, %v987
    %v990 = vmul.f32 %v988, 1.442695
    %v991 = vpow.pop %v990
    %v992 = vmul.f32 %v989, 1.442695
    %v993 = vpow.pop %v992
    %v994 = vrot.slane %v991, 4
    %v995 = vadd.f32 %v991, %v994
    %v996 = vrot.slane %v995, 2
    %v997 = vadd.f32 %v995, %v996
    %v998 = vrot.slane %v997, 1
    %v999 = vadd.f32 %v997, %v998
    %v1000 = vrot.slane %v993, 4
    %v1001 = vadd.f32 %v993, %v1000
    %v1002 = vrot.slane %v1001, 2
    %v1003 = vadd.f32 %v1001, %v1002
    %v1004 = vrot.slane %v1003, 1
    %v1005 = vadd.f32 %v1003, %v1004
    %v1006 = vmul.f32 %v991, %v12
    %v1007 = vmul.f32 %v993, %v13
    %v1008 = vsel %vm160, %v1006, 0.0
    %v1009 = vrot.slane %v1008, 4
    %v1010 = vadd.f32 %v1008, %v1009
    %v1011 = vrot.slane %v1010, 2
    %v1012 = vadd.f32 %v1010, %v1011
    %v1013 = vrot.slane %v1012, 1
    %v1014 = vadd.f32 %v1012, %v1013
    %v1015 = vsel %vm160, %v1007, 0.0
    %v1016 = vrot.slane %v1015, 4
    %v1017 = vadd.f32 %v1015, %v1016
    %v1018 = vrot.slane %v1017, 2
    %v1019 = vadd.f32 %v1017, %v1018
    %v1020 = vrot.slane %v1019, 1
    %v1021 = vadd.f32 %v1019, %v1020
    %v1022 = vrcp.pop %v999
    %v1023 = vrcp.pop %v1005
    %v1024 = vmul.f32 %v1014, %v1022
    %v1025 = vmul.f32 %v1021, %v1023
    %1026 = vrot.lane.b32.xlu0 %v930, 80
    %v1027 = vpop.permute.xlu0 %1026
    %v1031 = vsel %vm222, %v1025, %v1024
    %1032 = vrot.lane.b32.xlu0 %v1031, 16
    %v1033 = vpop.permute.xlu0 %1032
    %v1035 = vsel %vm160, %v1027, %v1033
    %v1037 = vsel %vm23, %v1035, 0
    %1039 = vmatprep.subr.mxu0 0.0
    %1040 = vmatpush1.msra.mxu0 %v14
    %1041 = vmatprep.subr.mxu0 0.0
    %1042 = vmatpush1.msra.mxu0 %v15
    %1043 = vmatprep.subr.mxu0 0.0
    %1044 = vmatpush1.msra.mxu0 %v16
    %1045 = vmatprep.subr.mxu0 0.0
    %1046 = vmatpush1.msra.mxu0 %v17
    %1047 = vmatprep.subr.mxu0 0.0
    %1048 = vmatpush1.msra.mxu0 0.0
    %1049 = vmatprep.subr.mxu0 0.0
    %1050 = vmatpush1.msra.mxu0 0.0
    %1051 = vmatprep.subr.mxu0 0.0
    %1052 = vmatpush1.msra.mxu0 0.0
    %1053 = vmatprep.subr.mxu0 0.0
    %1054 = vmatpush1.msra.mxu0 0.0
    %1055 = vmatprep.subr.mxu0 0.0
    %1056 = vmatpush1.msra.mxu0 0.0
    %1057 = vmatprep.subr.mxu0 0.0
    %1058 = vmatpush1.msra.mxu0 0.0
    %1059 = vmatprep.subr.mxu0 0.0
    %1060 = vmatpush1.msra.mxu0 0.0
    %1061 = vmatprep.subr.mxu0 0.0
    %1062 = vmatpush1.msra.mxu0 0.0
    %1063 = vmatprep.subr.mxu0 0.0
    %1064 = vmatpush1.msra.mxu0 0.0
    %1065 = vmatprep.subr.mxu0 0.0
    %1066 = vmatpush1.msra.mxu0 0.0
    %1067 = vmatprep.subr.mxu0 0.0
    %1068 = vmatpush1.msra.mxu0 0.0
    %1069 = vmatprep.subr.mxu0 0.0
    %1070 = vmatpush1.msra.mxu0 0.0
    %1071 = vmatprep.subr.mxu0 0.0
    %1072 = vmatpush1.msra.mxu0 0.0
    %1073 = vmatprep.subr.mxu0 0.0
    %1074 = vmatpush1.msra.mxu0 0.0
    %1075 = vmatprep.subr.mxu0 0.0
    %1076 = vmatpush1.msra.mxu0 0.0
    %1077 = vmatprep.subr.mxu0 0.0
    %1078 = vmatpush1.msra.mxu0 0.0
    %1079 = vmatprep.subr.mxu0 0.0
    %1080 = vmatpush1.msra.mxu0 0.0
    %1081 = vmatprep.subr.mxu0 0.0
    %1082 = vmatpush1.msra.mxu0 0.0
    %1083 = vmatprep.subr.mxu0 0.0
    %1084 = vmatpush1.msra.mxu0 0.0
    %1085 = vmatprep.subr.mxu0 0.0
    %1086 = vmatpush1.msra.mxu0 0.0
    %1087 = vmatprep.subr.mxu0 0.0
    %1088 = vmatpush1.msra.mxu0 0.0
    %1089 = vmatprep.subr.mxu0 0.0
    %1090 = vmatpush1.msra.mxu0 0.0
    %1091 = vmatprep.subr.mxu0 0.0
    %1092 = vmatpush1.msra.mxu0 0.0
    %1093 = vmatprep.subr.mxu0 0.0
    %1094 = vmatpush1.msra.mxu0 0.0
    %1095 = vmatprep.subr.mxu0 0.0
    %1096 = vmatpush1.msra.mxu0 0.0
    %1097 = vmatprep.subr.mxu0 0.0
    %1098 = vmatpush1.msra.mxu0 0.0
    %1099 = vmatprep.subr.mxu0 0.0
    %1100 = vmatpush1.msra.mxu0 0.0
    %1101 = vmatprep.subr.mxu0 0.0
    %1102 = vmatpush1.msra.mxu0 0.0
    %1103 = vmatprep.mubr.f32.mxu0 0.0
    %1104 = vmatmul.mubr.f32.gmra.mrb[0].mxu0 %v1037
    %v1105 = vpop.f32.mrb[0].mxu0
    %v1106 = vadd.f32 %v22, %v1105
    %v1107 = vpop.f32.mrb[0].mxu0
    %1108 = vdwg.mxu0
    %v1109 = vxor.u32 %v1106, 2147483648
    %v1110 = vmul.f32 %v1109, 1.442695
    %v1111 = vpow.pop %v1110
    %v1112 = vadd.f32 %v1111, 1.0
    %v1113 = vrcp.pop %v1112
    %v1114 = vmul.f32 1.0, %v1113
    %v1115 = vtanh.pop %v1106
    %v1116 = vmul.f32 %v1114, %v924
    %1118 = vrot.lane.b32.xlu0 %v1115, 96
    %v1119 = vpop.permute.xlu0 %1118
    %v1121 = vmul.f32 %v1114, %v1119
    %1123 = vrot.lane.b32.xlu0 %v1121, 16
    %v1124 = vpop.permute.xlu0 %1123
    %v1126 = vadd.f32 %v1116, %v1124
    %v1127 = vtanh.pop %v1126
    %1129 = vrot.lane.b32.xlu0 %v1127, 32
    %v1130 = vpop.permute.xlu0 %1129
    %v1132 = vmul.f32 %v1114, %v1130
    %v1135 = vunpack.c.l.s4 1966171168
    %v1136 = vunpack.c.0.s8 %v1135
    %v1137 = vlaneseq
    %v1138 = vshrl.u32 %v1137, 7
    %v1139 = vsub.s32 %v1136, %v1138
    %v1140 = vrot.slane %v1132, %v1139
    %v1141 = vcombine.high %v1140, %v1140
    %v1143 = vunpack.c.l.s4 1966171168
    %v1144 = vunpack.c.0.s8 %v1143
    %v1145 = vlaneseq
    %v1146 = vshrl.u32 %v1145, 7
    %v1147 = vsub.s32 %v1144, %v1146
    %v1148 = vrot.slane %v1140, %v1147
    %v1150 = vunpack.c.l.s4 1966171168
    %v1151 = vunpack.c.0.s8 %v1150
    %v1152 = vlaneseq
    %v1153 = vshrl.u32 %v1152, 7
    %v1154 = vsub.s32 %v1151, %v1153
    %v1155 = vrot.slane %v1141, %v1154
    %v1156 = vlaneseq
    %v1157 = vshrl.u32 %v1156, 7
    %v1158 = vsub.s32 0, %v1157
    %v1159 = vrot.slane %v1148, %v1158
    %v1160 = vlaneseq
    %v1161 = vshrl.u32 %v1160, 7
    %v1162 = vsub.s32 0, %v1161
    %v1163 = vrot.slane %v1155, %v1162
    %1164 = vrot.lane.b32.xlu0 %v1159, 80
    %v1165 = vpop.permute.xlu0 %1164
    %1166 = vrot.lane.b32.xlu0 %v1163, 80
    %v1167 = vpop.permute.xlu0 %1166
    %v1170 = vmul.f32 %v12, %v1165
    %v1171 = vmul.f32 %v13, %v1167
    %v1172 = vsel %vm160, %v1170, 0.0
    %1173 = vadd.xlane.f32.xlu0 %v1172
    %v1174 = vpop.xlane.xlu0 %1173
    %v1175 = vsel %vm160, %v1171, 0.0
    %1176 = vadd.xlane.f32.xlu0 %v1175
    %v1177 = vpop.xlane.xlu0 %1176
    %v1178 = vrot.slane %v1174, 4
    %v1179 = vmax.f32 %v1174, %v1178
    %v1180 = vrot.slane %v1179, 2
    %v1181 = vmax.f32 %v1179, %v1180
    %v1182 = vrot.slane %v1181, 1
    %v1183 = vmax.f32 %v1181, %v1182
    %v1184 = vrot.slane %v1177, 4
    %v1185 = vmax.f32 %v1177, %v1184
    %v1186 = vrot.slane %v1185, 2
    %v1187 = vmax.f32 %v1185, %v1186
    %v1188 = vrot.slane %v1187, 1
    %v1189 = vmax.f32 %v1187, %v1188
    %v1190 = vsub.f32 %v1174, %v1183
    %v1191 = vsub.f32 %v1177, %v1189
    %v1192 = vmul.f32 %v1190, 1.442695
    %v1193 = vpow.pop %v1192
    %v1194 = vmul.f32 %v1191, 1.442695
    %v1195 = vpow.pop %v1194
    %v1196 = vrot.slane %v1193, 4
    %v1197 = vadd.f32 %v1193, %v1196
    %v1198 = vrot.slane %v1197, 2
    %v1199 = vadd.f32 %v1197, %v1198
    %v1200 = vrot.slane %v1199, 1
    %v1201 = vadd.f32 %v1199, %v1200
    %v1202 = vrot.slane %v1195, 4
    %v1203 = vadd.f32 %v1195, %v1202
    %v1204 = vrot.slane %v1203, 2
    %v1205 = vadd.f32 %v1203, %v1204
    %v1206 = vrot.slane %v1205, 1
    %v1207 = vadd.f32 %v1205, %v1206
    %v1208 = vmul.f32 %v1193, %v12
    %v1209 = vmul.f32 %v1195, %v13
    %v1210 = vsel %vm160, %v1208, 0.0
    %v1211 = vrot.slane %v1210, 4
    %v1212 = vadd.f32 %v1210, %v1211
    %v1213 = vrot.slane %v1212, 2
    %v1214 = vadd.f32 %v1212, %v1213
    %v1215 = vrot.slane %v1214, 1
    %v1216 = vadd.f32 %v1214, %v1215
    %v1217 = vsel %vm160, %v1209, 0.0
    %v1218 = vrot.slane %v1217, 4
    %v1219 = vadd.f32 %v1217, %v1218
    %v1220 = vrot.slane %v1219, 2
    %v1221 = vadd.f32 %v1219, %v1220
    %v1222 = vrot.slane %v1221, 1
    %v1223 = vadd.f32 %v1221, %v1222
    %v1224 = vrcp.pop %v1201
    %v1225 = vrcp.pop %v1207
    %v1226 = vmul.f32 %v1216, %v1224
    %v1227 = vmul.f32 %v1223, %v1225
    %1228 = vrot.lane.b32.xlu0 %v1132, 80
    %v1229 = vpop.permute.xlu0 %1228
    %v1233 = vsel %vm222, %v1227, %v1226
    %1234 = vrot.lane.b32.xlu0 %v1233, 16
    %v1235 = vpop.permute.xlu0 %1234
    %v1237 = vsel %vm160, %v1229, %v1235
    %v1239 = vsel %vm23, %v1237, 0
    %1241 = vmatprep.subr.mxu0 0.0
    %1242 = vmatpush1.msra.mxu0 %v14
    %1243 = vmatprep.subr.mxu0 0.0
    %1244 = vmatpush1.msra.mxu0 %v15
    %1245 = vmatprep.subr.mxu0 0.0
    %1246 = vmatpush1.msra.mxu0 %v16
    %1247 = vmatprep.subr.mxu0 0.0
    %1248 = vmatpush1.msra.mxu0 %v17
    %1249 = vmatprep.subr.mxu0 0.0
    %1250 = vmatpush1.msra.mxu0 0.0
    %1251 = vmatprep.subr.mxu0 0.0
    %1252 = vmatpush1.msra.mxu0 0.0
    %1253 = vmatprep.subr.mxu0 0.0
    %1254 = vmatpush1.msra.mxu0 0.0
    %1255 = vmatprep.subr.mxu0 0.0
    %1256 = vmatpush1.msra.mxu0 0.0
    %1257 = vmatprep.subr.mxu0 0.0
    %1258 = vmatpush1.msra.mxu0 0.0
    %1259 = vmatprep.subr.mxu0 0.0
    %1260 = vmatpush1.msra.mxu0 0.0
    %1261 = vmatprep.subr.mxu0 0.0
    %1262 = vmatpush1.msra.mxu0 0.0
    %1263 = vmatprep.subr.mxu0 0.0
    %1264 = vmatpush1.msra.mxu0 0.0
    %1265 = vmatprep.subr.mxu0 0.0
    %1266 = vmatpush1.msra.mxu0 0.0
    %1267 = vmatprep.subr.mxu0 0.0
    %1268 = vmatpush1.msra.mxu0 0.0
    %1269 = vmatprep.subr.mxu0 0.0
    %1270 = vmatpush1.msra.mxu0 0.0
    %1271 = vmatprep.subr.mxu0 0.0
    %1272 = vmatpush1.msra.mxu0 0.0
    %1273 = vmatprep.subr.mxu0 0.0
    %1274 = vmatpush1.msra.mxu0 0.0
    %1275 = vmatprep.subr.mxu0 0.0
    %1276 = vmatpush1.msra.mxu0 0.0
    %1277 = vmatprep.subr.mxu0 0.0
    %1278 = vmatpush1.msra.mxu0 0.0
    %1279 = vmatprep.subr.mxu0 0.0
    %1280 = vmatpush1.msra.mxu0 0.0
    %1281 = vmatprep.subr.mxu0 0.0
    %1282 = vmatpush1.msra.mxu0 0.0
    %1283 = vmatprep.subr.mxu0 0.0
    %1284 = vmatpush1.msra.mxu0 0.0
    %1285 = vmatprep.subr.mxu0 0.0
    %1286 = vmatpush1.msra.mxu0 0.0
    %1287 = vmatprep.subr.mxu0 0.0
    %1288 = vmatpush1.msra.mxu0 0.0
    %1289 = vmatprep.subr.mxu0 0.0
    %1290 = vmatpush1.msra.mxu0 0.0
    %1291 = vmatprep.subr.mxu0 0.0
    %1292 = vmatpush1.msra.mxu0 0.0
    %1293 = vmatprep.subr.mxu0 0.0
    %1294 = vmatpush1.msra.mxu0 0.0
    %1295 = vmatprep.subr.mxu0 0.0
    %1296 = vmatpush1.msra.mxu0 0.0
    %1297 = vmatprep.subr.mxu0 0.0
    %1298 = vmatpush1.msra.mxu0 0.0
    %1299 = vmatprep.subr.mxu0 0.0
    %1300 = vmatpush1.msra.mxu0 0.0
    %1301 = vmatprep.subr.mxu0 0.0
    %1302 = vmatpush1.msra.mxu0 0.0
    %1303 = vmatprep.subr.mxu0 0.0
    %1304 = vmatpush1.msra.mxu0 0.0
    %1305 = vmatprep.mubr.f32.mxu0 0.0
    %1306 = vmatmul.mubr.f32.gmra.mrb[0].mxu0 %v1239
    %v1307 = vpop.f32.mrb[0].mxu0
    %v1308 = vadd.f32 %v22, %v1307
    %v1309 = vpop.f32.mrb[0].mxu0
    %1310 = vdwg.mxu0
    %v1311 = vxor.u32 %v1308, 2147483648
    %v1312 = vmul.f32 %v1311, 1.442695
    %v1313 = vpow.pop %v1312
    %v1314 = vadd.f32 %v1313, 1.0
    %v1315 = vrcp.pop %v1314
    %v1316 = vmul.f32 1.0, %v1315
    %v1317 = vtanh.pop %v1308
    %v1318 = vmul.f32 %v1316, %v1126
    %1320 = vrot.lane.b32.xlu0 %v1317, 96
    %v1321 = vpop.permute.xlu0 %1320
    %v1323 = vmul.f32 %v1316, %v1321
    %1325 = vrot.lane.b32.xlu0 %v1323, 16
    %v1326 = vpop.permute.xlu0 %1325
    %v1328 = vadd.f32 %v1318, %v1326
    %v1329 = vtanh.pop %v1328
    %1331 = vrot.lane.b32.xlu0 %v1329, 32
    %v1332 = vpop.permute.xlu0 %1331
    %v1334 = vmul.f32 %v1316, %v1332
    %v1337 = vunpack.c.l.s4 1966171168
    %v1338 = vunpack.c.0.s8 %v1337
    %v1339 = vlaneseq
    %v1340 = vshrl.u32 %v1339, 7
    %v1341 = vsub.s32 %v1338, %v1340
    %v1342 = vrot.slane %v1334, %v1341
    %v1343 = vcombine.high %v1342, %v1342
    %v1345 = vunpack.c.l.s4 1966171168
    %v1346 = vunpack.c.0.s8 %v1345
    %v1347 = vlaneseq
    %v1348 = vshrl.u32 %v1347, 7
    %v1349 = vsub.s32 %v1346, %v1348
    %v1350 = vrot.slane %v1342, %v1349
    %v1352 = vunpack.c.l.s4 1966171168
    %v1353 = vunpack.c.0.s8 %v1352
    %v1354 = vlaneseq
    %v1355 = vshrl.u32 %v1354, 7
    %v1356 = vsub.s32 %v1353, %v1355
    %v1357 = vrot.slane %v1343, %v1356
    %v1358 = vlaneseq
    %v1359 = vshrl.u32 %v1358, 7
    %v1360 = vsub.s32 0, %v1359
    %v1361 = vrot.slane %v1350, %v1360
    %v1362 = vlaneseq
    %v1363 = vshrl.u32 %v1362, 7
    %v1364 = vsub.s32 0, %v1363
    %v1365 = vrot.slane %v1357, %v1364
    %1366 = vrot.lane.b32.xlu0 %v1361, 80
    %v1367 = vpop.permute.xlu0 %1366
    %1368 = vrot.lane.b32.xlu0 %v1365, 80
    %v1369 = vpop.permute.xlu0 %1368
    %v1372 = vmul.f32 %v12, %v1367
    %v1373 = vmul.f32 %v13, %v1369
    %v1374 = vsel %vm160, %v1372, 0.0
    %1375 = vadd.xlane.f32.xlu0 %v1374
    %v1376 = vpop.xlane.xlu0 %1375
    %v1377 = vsel %vm160, %v1373, 0.0
    %1378 = vadd.xlane.f32.xlu0 %v1377
    %v1379 = vpop.xlane.xlu0 %1378
    %v1380 = vrot.slane %v1376, 4
    %v1381 = vmax.f32 %v1376, %v1380
    %v1382 = vrot.slane %v1381, 2
    %v1383 = vmax.f32 %v1381, %v1382
    %v1384 = vrot.slane %v1383, 1
    %v1385 = vmax.f32 %v1383, %v1384
    %v1386 = vrot.slane %v1379, 4
    %v1387 = vmax.f32 %v1379, %v1386
    %v1388 = vrot.slane %v1387, 2
    %v1389 = vmax.f32 %v1387, %v1388
    %v1390 = vrot.slane %v1389, 1
    %v1391 = vmax.f32 %v1389, %v1390
    %v1392 = vsub.f32 %v1376, %v1385
    %v1393 = vsub.f32 %v1379, %v1391
    %v1394 = vmul.f32 %v1392, 1.442695
    %v1395 = vpow.pop %v1394
    %v1396 = vmul.f32 %v1393, 1.442695
    %v1397 = vpow.pop %v1396
    %v1398 = vrot.slane %v1395, 4
    %v1399 = vadd.f32 %v1395, %v1398
    %v1400 = vrot.slane %v1399, 2
    %v1401 = vadd.f32 %v1399, %v1400
    %v1402 = vrot.slane %v1401, 1
    %v1403 = vadd.f32 %v1401, %v1402
    %v1404 = vrot.slane %v1397, 4
    %v1405 = vadd.f32 %v1397, %v1404
    %v1406 = vrot.slane %v1405, 2
    %v1407 = vadd.f32 %v1405, %v1406
    %v1408 = vrot.slane %v1407, 1
    %v1409 = vadd.f32 %v1407, %v1408
    %v1410 = vmul.f32 %v1395, %v12
    %v1411 = vmul.f32 %v1397, %v13
    %v1412 = vsel %vm160, %v1410, 0.0
    %v1413 = vrot.slane %v1412, 4
    %v1414 = vadd.f32 %v1412, %v1413
    %v1415 = vrot.slane %v1414, 2
    %v1416 = vadd.f32 %v1414, %v1415
    %v1417 = vrot.slane %v1416, 1
    %v1418 = vadd.f32 %v1416, %v1417
    %v1419 = vsel %vm160, %v1411, 0.0
    %v1420 = vrot.slane %v1419, 4
    %v1421 = vadd.f32 %v1419, %v1420
    %v1422 = vrot.slane %v1421, 2
    %v1423 = vadd.f32 %v1421, %v1422
    %v1424 = vrot.slane %v1423, 1
    %v1425 = vadd.f32 %v1423, %v1424
    %v1426 = vrcp.pop %v1403
    %v1427 = vrcp.pop %v1409
    %v1428 = vmul.f32 %v1418, %v1426
    %v1429 = vmul.f32 %v1425, %v1427
    %1430 = vrot.lane.b32.xlu0 %v1334, 80
    %v1431 = vpop.permute.xlu0 %1430
    %v1435 = vsel %vm222, %v1429, %v1428
    %1436 = vrot.lane.b32.xlu0 %v1435, 16
    %v1437 = vpop.permute.xlu0 %1436
    %v1439 = vsel %vm160, %v1431, %v1437
    %v1441 = vsel %vm23, %v1439, 0
    %1443 = vmatprep.subr.mxu0 0.0
    %1444 = vmatpush1.msra.mxu0 %v14
    %1445 = vmatprep.subr.mxu0 0.0
    %1446 = vmatpush1.msra.mxu0 %v15
    %1447 = vmatprep.subr.mxu0 0.0
    %1448 = vmatpush1.msra.mxu0 %v16
    %1449 = vmatprep.subr.mxu0 0.0
    %1450 = vmatpush1.msra.mxu0 %v17
    %1451 = vmatprep.subr.mxu0 0.0
    %1452 = vmatpush1.msra.mxu0 0.0
    %1453 = vmatprep.subr.mxu0 0.0
    %1454 = vmatpush1.msra.mxu0 0.0
    %1455 = vmatprep.subr.mxu0 0.0
    %1456 = vmatpush1.msra.mxu0 0.0
    %1457 = vmatprep.subr.mxu0 0.0
    %1458 = vmatpush1.msra.mxu0 0.0
    %1459 = vmatprep.subr.mxu0 0.0
    %1460 = vmatpush1.msra.mxu0 0.0
    %1461 = vmatprep.subr.mxu0 0.0
    %1462 = vmatpush1.msra.mxu0 0.0
    %1463 = vmatprep.subr.mxu0 0.0
    %1464 = vmatpush1.msra.mxu0 0.0
    %1465 = vmatprep.subr.mxu0 0.0
    %1466 = vmatpush1.msra.mxu0 0.0
    %1467 = vmatprep.subr.mxu0 0.0
    %1468 = vmatpush1.msra.mxu0 0.0
    %1469 = vmatprep.subr.mxu0 0.0
    %1470 = vmatpush1.msra.mxu0 0.0
    %1471 = vmatprep.subr.mxu0 0.0
    %1472 = vmatpush1.msra.mxu0 0.0
    %1473 = vmatprep.subr.mxu0 0.0
    %1474 = vmatpush1.msra.mxu0 0.0
    %1475 = vmatprep.subr.mxu0 0.0
    %1476 = vmatpush1.msra.mxu0 0.0
    %1477 = vmatprep.subr.mxu0 0.0
    %1478 = vmatpush1.msra.mxu0 0.0
    %1479 = vmatprep.subr.mxu0 0.0
    %1480 = vmatpush1.msra.mxu0 0.0
    %1481 = vmatprep.subr.mxu0 0.0
    %1482 = vmatpush1.msra.mxu0 0.0
    %1483 = vmatprep.subr.mxu0 0.0
    %1484 = vmatpush1.msra.mxu0 0.0
    %1485 = vmatprep.subr.mxu0 0.0
    %1486 = vmatpush1.msra.mxu0 0.0
    %1487 = vmatprep.subr.mxu0 0.0
    %1488 = vmatpush1.msra.mxu0 0.0
    %1489 = vmatprep.subr.mxu0 0.0
    %1490 = vmatpush1.msra.mxu0 0.0
    %1491 = vmatprep.subr.mxu0 0.0
    %1492 = vmatpush1.msra.mxu0 0.0
    %1493 = vmatprep.subr.mxu0 0.0
    %1494 = vmatpush1.msra.mxu0 0.0
    %1495 = vmatprep.subr.mxu0 0.0
    %1496 = vmatpush1.msra.mxu0 0.0
    %1497 = vmatprep.subr.mxu0 0.0
    %1498 = vmatpush1.msra.mxu0 0.0
    %1499 = vmatprep.subr.mxu0 0.0
    %1500 = vmatpush1.msra.mxu0 0.0
    %1501 = vmatprep.subr.mxu0 0.0
    %1502 = vmatpush1.msra.mxu0 0.0
    %1503 = vmatprep.subr.mxu0 0.0
    %1504 = vmatpush1.msra.mxu0 0.0
    %1505 = vmatprep.subr.mxu0 0.0
    %1506 = vmatpush1.msra.mxu0 0.0
    %1507 = vmatprep.mubr.f32.mxu0 0.0
    %1508 = vmatmul.mubr.f32.gmra.mrb[0].mxu0 %v1441
    %v1509 = vpop.f32.mrb[0].mxu0
    %v1510 = vadd.f32 %v22, %v1509
    %v1511 = vpop.f32.mrb[0].mxu0
    %1512 = vdwg.mxu0
    %v1513 = vxor.u32 %v1510, 2147483648
    %v1514 = vmul.f32 %v1513, 1.442695
    %v1515 = vpow.pop %v1514
    %v1516 = vadd.f32 %v1515, 1.0
    %v1517 = vrcp.pop %v1516
    %v1518 = vmul.f32 1.0, %v1517
    %v1519 = vtanh.pop %v1510
    %v1520 = vmul.f32 %v1518, %v1328
    %1522 = vrot.lane.b32.xlu0 %v1519, 96
    %v1523 = vpop.permute.xlu0 %1522
    %v1525 = vmul.f32 %v1518, %v1523
    %1527 = vrot.lane.b32.xlu0 %v1525, 16
    %v1528 = vpop.permute.xlu0 %1527
    %v1530 = vadd.f32 %v1520, %v1528
    %v1531 = vtanh.pop %v1530
    %1533 = vrot.lane.b32.xlu0 %v1531, 32
    %v1534 = vpop.permute.xlu0 %1533
    %v1536 = vmul.f32 %v1518, %v1534
    %v1539 = vunpack.c.l.s4 1966171168
    %v1540 = vunpack.c.0.s8 %v1539
    %v1541 = vlaneseq
    %v1542 = vshrl.u32 %v1541, 7
    %v1543 = vsub.s32 %v1540, %v1542
    %v1544 = vrot.slane %v1536, %v1543
    %v1545 = vcombine.high %v1544, %v1544
    %v1547 = vunpack.c.l.s4 1966171168
    %v1548 = vunpack.c.0.s8 %v1547
    %v1549 = vlaneseq
    %v1550 = vshrl.u32 %v1549, 7
    %v1551 = vsub.s32 %v1548, %v1550
    %v1552 = vrot.slane %v1544, %v1551
    %v1554 = vunpack.c.l.s4 1966171168
    %v1555 = vunpack.c.0.s8 %v1554
    %v1556 = vlaneseq
    %v1557 = vshrl.u32 %v1556, 7
    %v1558 = vsub.s32 %v1555, %v1557
    %v1559 = vrot.slane %v1545, %v1558
    %v1560 = vlaneseq
    %v1561 = vshrl.u32 %v1560, 7
    %v1562 = vsub.s32 0, %v1561
    %v1563 = vrot.slane %v1552, %v1562
    %v1564 = vlaneseq
    %v1565 = vshrl.u32 %v1564, 7
    %v1566 = vsub.s32 0, %v1565
    %v1567 = vrot.slane %v1559, %v1566
    %1568 = vrot.lane.b32.xlu0 %v1563, 80
    %v1569 = vpop.permute.xlu0 %1568
    %1570 = vrot.lane.b32.xlu0 %v1567, 80
    %v1571 = vpop.permute.xlu0 %1570
    %v1574 = vmul.f32 %v12, %v1569
    %v1575 = vmul.f32 %v13, %v1571
    %v1576 = vsel %vm160, %v1574, 0.0
    %1577 = vadd.xlane.f32.xlu0 %v1576
    %v1578 = vpop.xlane.xlu0 %1577
    %v1579 = vsel %vm160, %v1575, 0.0
    %1580 = vadd.xlane.f32.xlu0 %v1579
    %v1581 = vpop.xlane.xlu0 %1580
    %v1582 = vrot.slane %v1578, 4
    %v1583 = vmax.f32 %v1578, %v1582
    %v1584 = vrot.slane %v1583, 2
    %v1585 = vmax.f32 %v1583, %v1584
    %v1586 = vrot.slane %v1585, 1
    %v1587 = vmax.f32 %v1585, %v1586
    %v1588 = vrot.slane %v1581, 4
    %v1589 = vmax.f32 %v1581, %v1588
    %v1590 = vrot.slane %v1589, 2
    %v1591 = vmax.f32 %v1589, %v1590
    %v1592 = vrot.slane %v1591, 1
    %v1593 = vmax.f32 %v1591, %v1592
    %v1594 = vsub.f32 %v1578, %v1587
    %v1595 = vsub.f32 %v1581, %v1593
    %v1596 = vmul.f32 %v1594, 1.442695
    %v1597 = vpow.pop %v1596
    %v1598 = vmul.f32 %v1595, 1.442695
    %v1599 = vpow.pop %v1598
    %v1600 = vrot.slane %v1597, 4
    %v1601 = vadd.f32 %v1597, %v1600
    %v1602 = vrot.slane %v1601, 2
    %v1603 = vadd.f32 %v1601, %v1602
    %v1604 = vrot.slane %v1603, 1
    %v1605 = vadd.f32 %v1603, %v1604
    %v1606 = vrot.slane %v1599, 4
    %v1607 = vadd.f32 %v1599, %v1606
    %v1608 = vrot.slane %v1607, 2
    %v1609 = vadd.f32 %v1607, %v1608
    %v1610 = vrot.slane %v1609, 1
    %v1611 = vadd.f32 %v1609, %v1610
    %v1612 = vmul.f32 %v1597, %v12
    %v1613 = vmul.f32 %v1599, %v13
    %v1614 = vsel %vm160, %v1612, 0.0
    %v1615 = vrot.slane %v1614, 4
    %v1616 = vadd.f32 %v1614, %v1615
    %v1617 = vrot.slane %v1616, 2
    %v1618 = vadd.f32 %v1616, %v1617
    %v1619 = vrot.slane %v1618, 1
    %v1620 = vadd.f32 %v1618, %v1619
    %v1621 = vsel %vm160, %v1613, 0.0
    %v1622 = vrot.slane %v1621, 4
    %v1623 = vadd.f32 %v1621, %v1622
    %v1624 = vrot.slane %v1623, 2
    %v1625 = vadd.f32 %v1623, %v1624
    %v1626 = vrot.slane %v1625, 1
    %v1627 = vadd.f32 %v1625, %v1626
    %v1628 = vrcp.pop %v1605
    %v1629 = vrcp.pop %v1611
    %v1630 = vmul.f32 %v1620, %v1628
    %v1631 = vmul.f32 %v1627, %v1629
    %1632 = vrot.lane.b32.xlu0 %v1536, 80
    %v1633 = vpop.permute.xlu0 %1632
    %v1637 = vsel %vm222, %v1631, %v1630
    %1638 = vrot.lane.b32.xlu0 %v1637, 16
    %v1639 = vpop.permute.xlu0 %1638
    %v1641 = vsel %vm160, %v1633, %v1639
    %1646 = vrot.lane.b32.xlu0 %v14, 64
    %v1647 = vpop.permute.xlu0 %1646
    %1648 = vrot.lane.b32.xlu0 %v15, 64
    %v1649 = vpop.permute.xlu0 %1648
    %1650 = vrot.lane.b32.xlu0 %v16, 64
    %v1651 = vpop.permute.xlu0 %1650
    %1652 = vrot.lane.b32.xlu0 %v17, 64
    %v1653 = vpop.permute.xlu0 %1652
    %1659 = vrot.lane.b32.xlu0 %v22, 64
    %v1660 = vpop.permute.xlu0 %1659
    %v1663 = vsel %vm23, %v1641, 0
    %1665 = vmatprep.subr.mxu0 0.0
    %1666 = vmatpush1.msra.mxu0 %v1647
    %1667 = vmatprep.subr.mxu0 0.0
    %1668 = vmatpush1.msra.mxu0 %v1649
    %1669 = vmatprep.subr.mxu0 0.0
    %1670 = vmatpush1.msra.mxu0 %v1651
    %1671 = vmatprep.subr.mxu0 0.0
    %1672 = vmatpush1.msra.mxu0 %v1653
    %1673 = vmatprep.subr.mxu0 0.0
    %1674 = vmatpush1.msra.mxu0 0.0
    %1675 = vmatprep.subr.mxu0 0.0
    %1676 = vmatpush1.msra.mxu0 0.0
    %1677 = vmatprep.subr.mxu0 0.0
    %1678 = vmatpush1.msra.mxu0 0.0
    %1679 = vmatprep.subr.mxu0 0.0
    %1680 = vmatpush1.msra.mxu0 0.0
    %1681 = vmatprep.subr.mxu0 0.0
    %1682 = vmatpush1.msra.mxu0 0.0
    %1683 = vmatprep.subr.mxu0 0.0
    %1684 = vmatpush1.msra.mxu0 0.0
    %1685 = vmatprep.subr.mxu0 0.0
    %1686 = vmatpush1.msra.mxu0 0.0
    %1687 = vmatprep.subr.mxu0 0.0
    %1688 = vmatpush1.msra.mxu0 0.0
    %1689 = vmatprep.subr.mxu0 0.0
    %1690 = vmatpush1.msra.mxu0 0.0
    %1691 = vmatprep.subr.mxu0 0.0
    %1692 = vmatpush1.msra.mxu0 0.0
    %1693 = vmatprep.subr.mxu0 0.0
    %1694 = vmatpush1.msra.mxu0 0.0
    %1695 = vmatprep.subr.mxu0 0.0
    %1696 = vmatpush1.msra.mxu0 0.0
    %1697 = vmatprep.subr.mxu0 0.0
    %1698 = vmatpush1.msra.mxu0 0.0
    %1699 = vmatprep.subr.mxu0 0.0
    %1700 = vmatpush1.msra.mxu0 0.0
    %1701 = vmatprep.subr.mxu0 0.0
    %1702 = vmatpush1.msra.mxu0 0.0
    %1703 = vmatprep.subr.mxu0 0.0
    %1704 = vmatpush1.msra.mxu0 0.0
    %1705 = vmatprep.subr.mxu0 0.0
    %1706 = vmatpush1.msra.mxu0 0.0
    %1707 = vmatprep.subr.mxu0 0.0
    %1708 = vmatpush1.msra.mxu0 0.0
    %1709 = vmatprep.subr.mxu0 0.0
    %1710 = vmatpush1.msra.mxu0 0.0
    %1711 = vmatprep.subr.mxu0 0.0
    %1712 = vmatpush1.msra.mxu0 0.0
    %1713 = vmatprep.subr.mxu0 0.0
    %1714 = vmatpush1.msra.mxu0 0.0
    %1715 = vmatprep.subr.mxu0 0.0
    %1716 = vmatpush1.msra.mxu0 0.0
    %1717 = vmatprep.subr.mxu0 0.0
    %1718 = vmatpush1.msra.mxu0 0.0
    %1719 = vmatprep.subr.mxu0 0.0
    %1720 = vmatpush1.msra.mxu0 0.0
    %1721 = vmatprep.subr.mxu0 0.0
    %1722 = vmatpush1.msra.mxu0 0.0
    %1723 = vmatprep.subr.mxu0 0.0
    %1724 = vmatpush1.msra.mxu0 0.0
    %1725 = vmatprep.subr.mxu0 0.0
    %1726 = vmatpush1.msra.mxu0 0.0
    %1727 = vmatprep.subr.mxu0 0.0
    %1728 = vmatpush1.msra.mxu0 0.0
    %1729 = vmatprep.mubr.f32.mxu0 0.0
    %1730 = vmatmul.mubr.f32.gmra.mrb[0].mxu0 %v1663
    %v1731 = vpop.f32.mrb[0].mxu0
    %v1732 = vadd.f32 %v1660, %v1731
    %v1733 = vpop.f32.mrb[0].mxu0
    %1734 = vdwg.mxu0
    %v1735 = vmax.f32 %v1732, 0.0
    %vm1736 = vcmask 123904
    %1737 = vst.msk [vmem:[#allocation2] sm:$0x3] %vm1736, %v1735
    // Predicated region
    $region10: #{set2set_pallas.1} parent=1 // pred_check
      _
    $region11: #{set2set_pallas.1} parent=1 // pred_check_branch
      %1739 = sbr.rel (0) target = $region13
    $region12: #{set2set_pallas.1} parent=1 // pred_region
      %s1741 = ssub.s32 32, 32
      %1742 = vsyncadd [#allocation3], %s1741
      %s1744 = sshll.u32 [#allocation2], 4
      %s1745 = int_to_ptr.vmem [resolvable:$true] %s1744
      %1747 = dma.vmem_to_hbm [thread:$0]  %s1745, 32, %s2, [#allocation3]
    $region13: #{set2set_pallas.1} parent=1 // pred_fallthru
      _
    // Predicated region
    $region14: #{set2set_pallas.1} parent=1 // pred_check
      _
    $region15: #{set2set_pallas.1} parent=1 // pred_check_branch
      %1749 = sbr.rel (0) target = $region17
    $region16: #{set2set_pallas.1} parent=1 // pred_region
      %1750 = dma.done [#allocation3], 32
    $region17: #{set2set_pallas.1} parent=1 // pred_fallthru
      _
    %1751 = vsyncpa [#allocation3], 1

</llo_original>
